<compile_context>
chip_gen: v7x
topology: tpu7x:2x2x1
jax: 0.10.0
libtpu: 0.0.40
codegen_flags: <defaults>
</compile_context>

<pallas_src>
import jax
import jax.numpy as jnp
from jax.experimental import pallas as pl
from jax.experimental.pallas import tpu as pltpu


def _round_up(x: int, m: int) -> int:
    return (x + m - 1) // m * m


def _tpu_hw_params():
    """Return (feature_alignment, usable VMEM budget bytes) for this TPU generation."""
    try:
        kind = jax.devices()[0].device_kind.lower()
    except Exception:  # pragma: no cover - defensive
        kind = ""
    compact = kind.replace(" ", "").replace("-", "")
    is_v7 = ("v7" in kind) or ("tpu7" in compact)
    old_gen = any(t in kind for t in ("v2", "v3", "v4", "v5"))
    # v6e / v7x MXUs are 2x256x256 -> align feature dims to 256; older gens use 128.
    feat_align = 128 if old_gen else 256
    # Physical VMEM per TensorCore: ~64 MiB on v7x, ~128 MiB on v5e/v6e.
    vmem_phys = (64 if is_v7 else 128) * 1024 * 1024
    try:
        info = pltpu.get_tpu_info()
        reported = int(getattr(info, "vmem_capacity_bytes", vmem_phys))
        vmem_phys = min(vmem_phys, reported)  # be conservative
    except Exception:
        pass
    vmem_cap = min(vmem_phys - 8 * 1024 * 1024, int(0.85 * vmem_phys))
    return feat_align, vmem_cap


def mlp_kernel(x_ref, w1_ref, b1_ref, w2_ref, b2_ref, w3_ref, b3_ref, o_ref):
    """Three MXU matmuls (bf16 in, f32 accumulate) with bias+ReLU epilogues on the VPU."""
    cdt = w1_ref.dtype  # compute dtype for the MXU (bf16 by default)
    x = x_ref[...].astype(cdt)
    h1 = jnp.dot(x, w1_ref[...], preferred_element_type=jnp.float32) + b1_ref[...]
    h1 = jnp.maximum(h1, 0.0)
    h2 = jnp.dot(h1.astype(cdt), w2_ref[...], preferred_element_type=jnp.float32) + b2_ref[...]
    h2 = jnp.maximum(h2, 0.0)
    out = jnp.dot(h2.astype(cdt), w3_ref[...], preferred_element_type=jnp.float32) + b3_ref[...]
    o_ref[...] = out.astype(o_ref.dtype)


def prepare_mlp_params(w1, b1, w2, b2, w3, b3, *, compute_dtype=jnp.bfloat16,
                       feat_align=None):
    """Pad + cast weights once (hoisted out of the per-call hot path).

    Zero padding is inert: padded hidden columns get bias 0 and stay exactly 0
    through the ReLUs; padded output columns are sliced off after the kernel.
    """
    if feat_align is None:
        feat_align, _ = _tpu_hw_params()
    n_in, n_hid = w1.shape
    n_out = w3.shape[1]

    Kp = _round_up(n_in, 128)            # lane-dense x loads / full-K first GEMM
    H = _round_up(n_hid, feat_align)     # MXU-aligned hidden width
    N = _round_up(n_out, feat_align)     # MXU-aligned (and lane-dense) output width

    w1p = jnp.pad(w1, ((0, Kp - n_in), (0, H - n_hid))).astype(compute_dtype)
    w2p = jnp.pad(w2, ((0, H - n_hid), (0, H - n_hid))).astype(compute_dtype)
    w3p = jnp.pad(w3, ((0, H - n_hid), (0, N - n_out))).astype(compute_dtype)
    # Biases stay f32 (added to the f32 accumulator).
    b1p = jnp.pad(b1.astype(jnp.float32), (0, H - n_hid)).reshape(1, H)
    b2p = jnp.pad(b2.astype(jnp.float32), (0, H - n_hid)).reshape(1, H)
    b3p = jnp.pad(b3.astype(jnp.float32), (0, N - n_out)).reshape(1, N)

    return dict(w1=w1p, b1=b1p, w2=w2p, b2=b2p, w3=w3p, b3=b3p,
                n_in=n_in, n_hid=n_hid, n_out=n_out,
                Kp=Kp, H=H, N=N, compute_dtype=compute_dtype)


def mlp_pallas_prepared(x, p, *, max_tile_b=None):
    B, n_in = x.shape
    assert n_in == p["n_in"], "input feature dim mismatch with prepared params"
    Kp, H, N = p["Kp"], p["H"], p["N"]
    _, vmem_cap = _tpu_hw_params()

    x_itemsize = jnp.dtype(x.dtype).itemsize
    w_itemsize = jnp.dtype(p["compute_dtype"]).itemsize
    out_dtype = x.dtype
    out_itemsize = jnp.dtype(out_dtype).itemsize

    if max_tile_b is None:
        # Bigger batch tiles on v5e/v6e (128 MiB VMEM); smaller on v7x (64 MiB/TC).
        max_tile_b = 1024 if vmem_cap > 72 * 1024 * 1024 else 512

    def footprint(tile_b, weight_bufs):
        resident_w = weight_bufs * (Kp * H + H * H + H * N) * w_itemsize
        resident_b = weight_bufs * (2 * H + N) * 4
        streamed = 2 * tile_b * (Kp * x_itemsize + N * out_itemsize)   # double-buffered
        interm = tile_b * (2 * H * 4 + Kp * w_itemsize + 2 * H * w_itemsize)
        return resident_w + resident_b + streamed + interm

    if footprint(8, 1) > int(0.9 * vmem_cap):
        # TODO(synk): add a K-tiled fallback (extra "arbitrary" grid axis over H-chunks
        # of w2/w3 + f32 VMEM accumulator with pl.when init/finalize) for hidden sizes
        # whose weights do not fit VMEM-resident on this generation.
        raise ValueError("MLP weights too large to keep VMEM-resident on this TPU; "
                         "reduce n_hid (K-tiled fallback not implemented).")

    # Batch tile: multiple of 8 (f32 sublane); shrink while the footprint exceeds budget.
    TILE_B = min(max_tile_b, _round_up(B, 8))
    while TILE_B > 8 and footprint(TILE_B, 1) > int(0.8 * vmem_cap):
        TILE_B = max(8, _round_up(TILE_B // 2, 8))
    B_pad = _round_up(B, TILE_B)

    # Only x is padded per call (its data changes every call); weights are pre-padded.
    if B_pad != B or Kp != n_in:
        xp = jnp.pad(x, ((0, B_pad - B), (0, Kp - n_in)))
    else:
        xp = x

    grid = (B_pad // TILE_B,)
    args = (xp, p["w1"], p["b1"], p["w2"], p["b2"], p["w3"], p["b3"])

    def build(single_buffer_weights):
        weight_bufs = 1 if single_buffer_weights else 2
        vmem_limit = min(max(int(1.5 * footprint(TILE_B, weight_bufs)),
                             8 * 1024 * 1024),
                         vmem_cap)

        def resident(shape):
            # Same block every grid step -> loaded once, stays VMEM-resident.
            if single_buffer_weights:
                return pl.BlockSpec(shape, lambda i: (0, 0),
                                    pipeline_mode=pl.Buffered(1))
            return pl.BlockSpec(shape, lambda i: (0, 0))

        return pl.pallas_call(
            mlp_kernel,
            out_shape=jax.ShapeDtypeStruct((B_pad, N), out_dtype),
            grid=grid,
            in_specs=[
                pl.BlockSpec((TILE_B, Kp), lambda i: (i, 0)),  # streamed activations
                resident((Kp, H)), resident((1, H)),
                resident((H, H)),  resident((1, H)),
                resident((H, N)),  resident((1, N)),
            ],
            out_specs=pl.BlockSpec((TILE_B, N), lambda i: (i, 0)),
            compiler_params=pltpu.CompilerParams(
                dimension_semantics=("parallel",),   # megacore sharding on v7x
                vmem_limit_bytes=int(vmem_limit),
            ),
        )

    try:
        out_pad = build(single_buffer_weights=True)(*args)
    except Exception:
        # Fallback: default (double) buffering of the resident weights.
        out_pad = build(single_buffer_weights=False)(*args)

    return out_pad[:B, :p["n_out"]]


def mlp_pallas(x, w1, b1, w2, b2, w3, b3, **kwargs):
    """Convenience wrapper; prefer prepare_mlp_params + mlp_pallas_prepared in a loop."""
    return mlp_pallas_prepared(x, prepare_mlp_params(w1, b1, w2, b2, w3, b3), **kwargs)


def init_params(key, n_in, n_hid, n_out, dtype=jnp.float32):
    # PyTorch-style uniform(-1/sqrt(fan_in), 1/sqrt(fan_in)) init.
    ks = jax.random.split(key, 6)

    def lin(kw, kb, fan_in, fan_out):
        bound = 1.0 / (fan_in ** 0.5)
        w = jax.random.uniform(kw, (fan_in, fan_out), dtype, -bound, bound)
        b = jax.random.uniform(kb, (fan_out,), dtype, -bound, bound)
        return w, b

    w1, b1 = lin(ks[0], ks[1], n_in, n_hid)
    w2, b2 = lin(ks[2], ks[3], n_hid, n_hid)
    w3, b3 = lin(ks[4], ks[5], n_hid, n_out)
    return w1, b1, w2, b2, w3, b3


if __name__ == "__main__":
    key = jax.random.PRNGKey(0)
    kx, kp = jax.random.split(key)

    B, n_in, n_hid, n_out = 8, 16, 32, 8
    x = jax.random.normal(kx, (B, n_in), jnp.float32)
    params = init_params(kp, n_in, n_hid, n_out)

    # Pad/cast weights once (hoisted out of the per-call hot path), then run.
    prepared = prepare_mlp_params(*params)
    out = mlp_pallas_prepared(x, prepared)
    out = jax.block_until_ready(out)

    # Reference check in plain JAX f32 (same math as the PyTorch module).
    w1, b1, w2, b2, w3, b3 = params
    h1 = jnp.maximum(x @ w1 + b1, 0.0)
    h2 = jnp.maximum(h1 @ w2 + b2, 0.0)
    ref = h2 @ w3 + b3

    assert out.shape == (B, n_out)
    # bf16 MXU matmuls with f32 accumulation -> loosened tolerance vs f32 reference.
    max_err = float(jnp.max(jnp.abs(out - ref)))
    assert jnp.allclose(out, ref, atol=5e-2, rtol=5e-2), f"max abs err {max_err}"

    print("KERNEL_OK")
</pallas_src>

<mosaic_0001>
module attributes {stable_mosaic.version = 11 : i64} {
  func.func @mlp_kernel(%arg0: i32, %arg1: memref<8x128xf32, #tpu.memory_space<vmem>>, %arg2: memref<128x256xbf16, #tpu.memory_space<vmem>>, %arg3: memref<1x256xf32, #tpu.memory_space<vmem>>, %arg4: memref<256x256xbf16, #tpu.memory_space<vmem>>, %arg5: memref<1x256xf32, #tpu.memory_space<vmem>>, %arg6: memref<256x256xbf16, #tpu.memory_space<vmem>>, %arg7: memref<1x256xf32, #tpu.memory_space<vmem>>, %arg8: memref<8x256xf32, #tpu.memory_space<vmem>>) attributes {dimension_semantics = [#tpu.dimension_semantics<parallel>], iteration_bounds = array<i64: 1>, scalar_prefetch = 0 : i64, scratch_operands = 0 : i64, tpu.core_type = #tpu.core_type<tc>, window_params = [{transform_indices = @transform_0, window_bounds = array<i64: 8, 128>}, {pipeline_mode = #tpu.pipeline_mode<synchronous>, transform_indices = @transform_1, window_bounds = array<i64: 128, 256>}, {pipeline_mode = #tpu.pipeline_mode<synchronous>, transform_indices = @transform_2, window_bounds = array<i64: 1, 256>}, {pipeline_mode = #tpu.pipeline_mode<synchronous>, transform_indices = @transform_3, window_bounds = array<i64: 256, 256>}, {pipeline_mode = #tpu.pipeline_mode<synchronous>, transform_indices = @transform_4, window_bounds = array<i64: 1, 256>}, {pipeline_mode = #tpu.pipeline_mode<synchronous>, transform_indices = @transform_5, window_bounds = array<i64: 256, 256>}, {pipeline_mode = #tpu.pipeline_mode<synchronous>, transform_indices = @transform_6, window_bounds = array<i64: 1, 256>}, {transform_indices = @transform_7, window_bounds = array<i64: 8, 256>}]} {
    %c0 = arith.constant 0 : index
    %c0_0 = arith.constant 0 : index
    %0 = vector.load %arg1[%c0, %c0_0] : memref<8x128xf32, #tpu.memory_space<vmem>>, vector<8x128xf32>
    %1 = arith.truncf %0 : vector<8x128xf32> to vector<8x128xbf16>
    %c0_1 = arith.constant 0 : index
    %c0_2 = arith.constant 0 : index
    %2 = vector.load %arg2[%c0_1, %c0_2] : memref<128x256xbf16, #tpu.memory_space<vmem>>, vector<128x256xbf16>
    %cst = arith.constant dense<0.000000e+00> : vector<8x256xf32>
    %3 = tpu.matmul %1, %2, %cst {dimension_numbers = #tpu.dot_dimension_numbers<[1], [0], [0], [1], [0, 0, 1, 1], [], []>} : vector<8x128xbf16>, vector<128x256xbf16>, vector<8x256xf32> -> vector<8x256xf32>
    %c0_3 = arith.constant 0 : index
    %c0_4 = arith.constant 0 : index
    %4 = vector.load %arg3[%c0_3, %c0_4] : memref<1x256xf32, #tpu.memory_space<vmem>>, vector<1x256xf32>
    %5 = vector.broadcast %4 : vector<1x256xf32> to vector<8x256xf32>
    %6 = arith.addf %3, %5 : vector<8x256xf32>
    %cst_5 = arith.constant 0.000000e+00 : f32
    %7 = vector.broadcast %cst_5 : f32 to vector<8x256xf32>
    %8 = arith.maximumf %6, %7 : vector<8x256xf32>
    %9 = arith.truncf %8 : vector<8x256xf32> to vector<8x256xbf16>
    %c0_6 = arith.constant 0 : index
    %c0_7 = arith.constant 0 : index
    %10 = vector.load %arg4[%c0_6, %c0_7] : memref<256x256xbf16, #tpu.memory_space<vmem>>, vector<256x256xbf16>
    %cst_8 = arith.constant dense<0.000000e+00> : vector<8x256xf32>
    %11 = tpu.matmul %9, %10, %cst_8 {dimension_numbers = #tpu.dot_dimension_numbers<[1], [0], [0], [1], [0, 0, 1, 1], [], []>} : vector<8x256xbf16>, vector<256x256xbf16>, vector<8x256xf32> -> vector<8x256xf32>
    %c0_9 = arith.constant 0 : index
    %c0_10 = arith.constant 0 : index
    %12 = vector.load %arg5[%c0_9, %c0_10] : memref<1x256xf32, #tpu.memory_space<vmem>>, vector<1x256xf32>
    %13 = vector.broadcast %12 : vector<1x256xf32> to vector<8x256xf32>
    %14 = arith.addf %11, %13 : vector<8x256xf32>
    %cst_11 = arith.constant 0.000000e+00 : f32
    %15 = vector.broadcast %cst_11 : f32 to vector<8x256xf32>
    %16 = arith.maximumf %14, %15 : vector<8x256xf32>
    %17 = arith.truncf %16 : vector<8x256xf32> to vector<8x256xbf16>
    %c0_12 = arith.constant 0 : index
    %c0_13 = arith.constant 0 : index
    %18 = vector.load %arg6[%c0_12, %c0_13] : memref<256x256xbf16, #tpu.memory_space<vmem>>, vector<256x256xbf16>
    %cst_14 = arith.constant dense<0.000000e+00> : vector<8x256xf32>
    %19 = tpu.matmul %17, %18, %cst_14 {dimension_numbers = #tpu.dot_dimension_numbers<[1], [0], [0], [1], [0, 0, 1, 1], [], []>} : vector<8x256xbf16>, vector<256x256xbf16>, vector<8x256xf32> -> vector<8x256xf32>
    %c0_15 = arith.constant 0 : index
    %c0_16 = arith.constant 0 : index
    %20 = vector.load %arg7[%c0_15, %c0_16] : memref<1x256xf32, #tpu.memory_space<vmem>>, vector<1x256xf32>
    %21 = vector.broadcast %20 : vector<1x256xf32> to vector<8x256xf32>
    %22 = arith.addf %19, %21 : vector<8x256xf32>
    %c0_17 = arith.constant 0 : index
    %c0_18 = arith.constant 0 : index
    %23 = vector.load %arg8[%c0_17, %c0_18] : memref<8x256xf32, #tpu.memory_space<vmem>>, vector<8x256xf32>
    tpu.vector_store %arg8[%c0_17, %c0_18], %22 {strides = array<i32>} : memref<8x256xf32, #tpu.memory_space<vmem>>, vector<8x256xf32>,
    return
  }
  func.func @transform_0(%arg0: i32) -> (i32, i32) {
    %c0_i32 = arith.constant 0 : i32
    %c0_i32_0 = arith.constant 0 : i32
    return %arg0, %c0_i32 : i32, i32
  }
  func.func @transform_1(%arg0: i32) -> (i32, i32) {
    %c0_i32 = arith.constant 0 : i32
    %c0_i32_0 = arith.constant 0 : i32
    %c0_i32_1 = arith.constant 0 : i32
    return %c0_i32, %c0_i32_0 : i32, i32
  }
  func.func @transform_2(%arg0: i32) -> (i32, i32) {
    %c0_i32 = arith.constant 0 : i32
    %c0_i32_0 = arith.constant 0 : i32
    %c0_i32_1 = arith.constant 0 : i32
    return %c0_i32, %c0_i32_0 : i32, i32
  }
  func.func @transform_3(%arg0: i32) -> (i32, i32) {
    %c0_i32 = arith.constant 0 : i32
    %c0_i32_0 = arith.constant 0 : i32
    %c0_i32_1 = arith.constant 0 : i32
    return %c0_i32, %c0_i32_0 : i32, i32
  }
  func.func @transform_4(%arg0: i32) -> (i32, i32) {
    %c0_i32 = arith.constant 0 : i32
    %c0_i32_0 = arith.constant 0 : i32
    %c0_i32_1 = arith.constant 0 : i32
    return %c0_i32, %c0_i32_0 : i32, i32
  }
  func.func @transform_5(%arg0: i32) -> (i32, i32) {
    %c0_i32 = arith.constant 0 : i32
    %c0_i32_0 = arith.constant 0 : i32
    %c0_i32_1 = arith.constant 0 : i32
    return %c0_i32, %c0_i32_0 : i32, i32
  }
  func.func @transform_6(%arg0: i32) -> (i32, i32) {
    %c0_i32 = arith.constant 0 : i32
    %c0_i32_0 = arith.constant 0 : i32
    %c0_i32_1 = arith.constant 0 : i32
    return %c0_i32, %c0_i32_0 : i32, i32
  }
  func.func @transform_7(%arg0: i32) -> (i32, i32) {
    %c0_i32 = arith.constant 0 : i32
    %c0_i32_0 = arith.constant 0 : i32
    return %arg0, %c0_i32 : i32, i32
  }
}

module attributes {stable_mosaic.version = 11 : i64} {
  func.func @mlp_kernel(%arg0: i32, %arg1: memref<8x128xf32, #tpu.memory_space<vmem>>, %arg2: memref<128x256xbf16, #tpu.memory_space<vmem>>, %arg3: memref<1x256xf32, #tpu.memory_space<vmem>>, %arg4: memref<256x256xbf16, #tpu.memory_space<vmem>>, %arg5: memref<1x256xf32, #tpu.memory_space<vmem>>, %arg6: memref<256x256xbf16, #tpu.memory_space<vmem>>, %arg7: memref<1x256xf32, #tpu.memory_space<vmem>>, %arg8: memref<8x256xf32, #tpu.memory_space<vmem>>) attributes {dimension_semantics = [#tpu.dimension_semantics<parallel>], iteration_bounds = array<i64: 1>, scalar_prefetch = 0 : i64, scratch_operands = 0 : i64, tpu.core_type = #tpu.core_type<tc>, window_params = [{transform_indices = @transform_0, window_bounds = array<i64: 8, 128>}, {pipeline_mode = #tpu.pipeline_mode<synchronous>, transform_indices = @transform_1, window_bounds = array<i64: 128, 256>}, {pipeline_mode = #tpu.pipeline_mode<synchronous>, transform_indices = @transform_2, window_bounds = array<i64: 1, 256>}, {pipeline_mode = #tpu.pipeline_mode<synchronous>, transform_indices = @transform_3, window_bounds = array<i64: 256, 256>}, {pipeline_mode = #tpu.pipeline_mode<synchronous>, transform_indices = @transform_4, window_bounds = array<i64: 1, 256>}, {pipeline_mode = #tpu.pipeline_mode<synchronous>, transform_indices = @transform_5, window_bounds = array<i64: 256, 256>}, {pipeline_mode = #tpu.pipeline_mode<synchronous>, transform_indices = @transform_6, window_bounds = array<i64: 1, 256>}, {transform_indices = @transform_7, window_bounds = array<i64: 8, 256>}]} {
    %c0 = arith.constant 0 : index
    %c0_0 = arith.constant 0 : index
    %0 = vector.load %arg1[%c0, %c0_0] : memref<8x128xf32, #tpu.memory_space<vmem>>, vector<8x128xf32>
    %1 = arith.truncf %0 : vector<8x128xf32> to vector<8x128xbf16>
    %c0_1 = arith.constant 0 : index
    %c0_2 = arith.constant 0 : index
    %2 = vector.load %arg2[%c0_1, %c0_2] : memref<128x256xbf16, #tpu.memory_space<vmem>>, vector<128x256xbf16>
    %cst = arith.constant dense<0.000000e+00> : vector<8x256xf32>
    %3 = tpu.matmul %1, %2, %cst {dimension_numbers = #tpu.dot_dimension_numbers<[1], [0], [0], [1], [0, 0, 1, 1], [], []>} : vector<8x128xbf16>, vector<128x256xbf16>, vector<8x256xf32> -> vector<8x256xf32>
    %c0_3 = arith.constant 0 : index
    %c0_4 = arith.constant 0 : index
    %4 = vector.load %arg3[%c0_3, %c0_4] : memref<1x256xf32, #tpu.memory_space<vmem>>, vector<1x256xf32>
    %5 = vector.broadcast %4 : vector<1x256xf32> to vector<8x256xf32>
    %6 = arith.addf %3, %5 : vector<8x256xf32>
    %cst_5 = arith.constant 0.000000e+00 : f32
    %7 = vector.broadcast %cst_5 : f32 to vector<8x256xf32>
    %8 = arith.maximumf %6, %7 : vector<8x256xf32>
    %9 = arith.truncf %8 : vector<8x256xf32> to vector<8x256xbf16>
    %c0_6 = arith.constant 0 : index
    %c0_7 = arith.constant 0 : index
    %10 = vector.load %arg4[%c0_6, %c0_7] : memref<256x256xbf16, #tpu.memory_space<vmem>>, vector<256x256xbf16>
    %cst_8 = arith.constant dense<0.000000e+00> : vector<8x256xf32>
    %11 = tpu.matmul %9, %10, %cst_8 {dimension_numbers = #tpu.dot_dimension_numbers<[1], [0], [0], [1], [0, 0, 1, 1], [], []>} : vector<8x256xbf16>, vector<256x256xbf16>, vector<8x256xf32> -> vector<8x256xf32>
    %c0_9 = arith.constant 0 : index
    %c0_10 = arith.constant 0 : index
    %12 = vector.load %arg5[%c0_9, %c0_10] : memref<1x256xf32, #tpu.memory_space<vmem>>, vector<1x256xf32>
    %13 = vector.broadcast %12 : vector<1x256xf32> to vector<8x256xf32>
    %14 = arith.addf %11, %13 : vector<8x256xf32>
    %cst_11 = arith.constant 0.000000e+00 : f32
    %15 = vector.broadcast %cst_11 : f32 to vector<8x256xf32>
    %16 = arith.maximumf %14, %15 : vector<8x256xf32>
    %17 = arith.truncf %16 : vector<8x256xf32> to vector<8x256xbf16>
    %c0_12 = arith.constant 0 : index
    %c0_13 = arith.constant 0 : index
    %18 = vector.load %arg6[%c0_12, %c0_13] : memref<256x256xbf16, #tpu.memory_space<vmem>>, vector<256x256xbf16>
    %cst_14 = arith.constant dense<0.000000e+00> : vector<8x256xf32>
    %19 = tpu.matmul %17, %18, %cst_14 {dimension_numbers = #tpu.dot_dimension_numbers<[1], [0], [0], [1], [0, 0, 1, 1], [], []>} : vector<8x256xbf16>, vector<256x256xbf16>, vector<8x256xf32> -> vector<8x256xf32>
    %c0_15 = arith.constant 0 : index
    %c0_16 = arith.constant 0 : index
    %20 = vector.load %arg7[%c0_15, %c0_16] : memref<1x256xf32, #tpu.memory_space<vmem>>, vector<1x256xf32>
    %21 = vector.broadcast %20 : vector<1x256xf32> to vector<8x256xf32>
    %22 = arith.addf %19, %21 : vector<8x256xf32>
    %c0_17 = arith.constant 0 : index
    %c0_18 = arith.constant 0 : index
    %23 = vector.load %arg8[%c0_17, %c0_18] : memref<8x256xf32, #tpu.memory_space<vmem>>, vector<8x256xf32>
    tpu.vector_store %arg8[%c0_17, %c0_18], %22 {strides = array<i32>} : memref<8x256xf32, #tpu.memory_space<vmem>>, vector<8x256xf32>,
    return
  }
  func.func @transform_0(%arg0: i32) -> (i32, i32) {
    %c0_i32 = arith.constant 0 : i32
    %c0_i32_0 = arith.constant 0 : i32
    return %arg0, %c0_i32 : i32, i32
  }
  func.func @transform_1(%arg0: i32) -> (i32, i32) {
    %c0_i32 = arith.constant 0 : i32
    %c0_i32_0 = arith.constant 0 : i32
    %c0_i32_1 = arith.constant 0 : i32
    return %c0_i32, %c0_i32_0 : i32, i32
  }
  func.func @transform_2(%arg0: i32) -> (i32, i32) {
    %c0_i32 = arith.constant 0 : i32
    %c0_i32_0 = arith.constant 0 : i32
    %c0_i32_1 = arith.constant 0 : i32
    return %c0_i32, %c0_i32_0 : i32, i32
  }
  func.func @transform_3(%arg0: i32) -> (i32, i32) {
    %c0_i32 = arith.constant 0 : i32
    %c0_i32_0 = arith.constant 0 : i32
    %c0_i32_1 = arith.constant 0 : i32
    return %c0_i32, %c0_i32_0 : i32, i32
  }
  func.func @transform_4(%arg0: i32) -> (i32, i32) {
    %c0_i32 = arith.constant 0 : i32
    %c0_i32_0 = arith.constant 0 : i32
    %c0_i32_1 = arith.constant 0 : i32
    return %c0_i32, %c0_i32_0 : i32, i32
  }
  func.func @transform_5(%arg0: i32) -> (i32, i32) {
    %c0_i32 = arith.constant 0 : i32
    %c0_i32_0 = arith.constant 0 : i32
    %c0_i32_1 = arith.constant 0 : i32
    return %c0_i32, %c0_i32_0 : i32, i32
  }
  func.func @transform_6(%arg0: i32) -> (i32, i32) {
    %c0_i32 = arith.constant 0 : i32
    %c0_i32_0 = arith.constant 0 : i32
    %c0_i32_1 = arith.constant 0 : i32
    return %c0_i32, %c0_i32_0 : i32, i32
  }
  func.func @transform_7(%arg0: i32) -> (i32, i32) {
    %c0_i32 = arith.constant 0 : i32
    %c0_i32_0 = arith.constant 0 : i32
    return %arg0, %c0_i32 : i32, i32
  }
}

</mosaic_0001>

<llo_original>
// kernel: tpu_custom_call.1
$region0: #{tpu_custom_call.1}
  #allocation0 [shape = 'u32[]', space=smem, size = 0x4, offset = 0x4, fixed_abs, tag = 'smem constant byte address 0x4 - core index']
  #allocation1 [shape = 'u32[144,128]{1,0:T(1,128)}', space=vmem, size = 0x12000, scoped, tag = 'internal scratch']
  %s0 = inlined_call_operand.hbm [shape: f32[8,128], index: 0, kind: input, shape index: {}]
  %s1 = inlined_call_operand.hbm [shape: bf16[128,256], index: 1, kind: input, shape index: {}]
  %s2 = inlined_call_operand.vmem [shape: f32[1,256], index: 2, kind: input, shape index: {}]
  %s3 = inlined_call_operand.hbm [shape: bf16[256,256], index: 3, kind: input, shape index: {}]
  %s4 = inlined_call_operand.vmem [shape: f32[1,256], index: 4, kind: input, shape index: {}]
  %s5 = inlined_call_operand.hbm [shape: bf16[256,256], index: 5, kind: input, shape index: {}]
  %s6 = inlined_call_operand.vmem [shape: f32[1,256], index: 6, kind: input, shape index: {}]
  %s7 = inlined_call_operand.hbm [shape: f32[8,256], index: 7, kind: output, shape index: {}]
  %s8 = sld [smem:[#allocation0]]
  $region54: #{tpu_custom_call.1} parent=0
    _
  %s10 = ssub.s32 1, %s8
  %s11 = scalar_select 0, %s10, %s8
  $region1: #{tpu_custom_call.1} parent=0
    #allocation2 [shape = 'u8[4096]{0}', space=vmem, size = 0x1000, scoped, tag = 'input window, operand 0, single buffered']
    #allocation3 [shape = 's32[1]{0}', space=sflag, size = 0x4, scoped, tag = 'scoped memory for tpu_custom_call.1']
    #allocation4 [shape = 's32[1]{0}', space=sflag, size = 0x4, scoped, tag = 'scoped memory for tpu_custom_call.1']
    #allocation5 [shape = 'u8[65536]{0}', space=vmem, size = 0x10000, scoped, tag = 'input window, operand 1, single buffered']
    #allocation6 [shape = 's32[1]{0}', space=sflag, size = 0x4, scoped, tag = 'scoped memory for tpu_custom_call.1']
    #allocation7 [shape = 'u8[131072]{0}', space=vmem, size = 0x20000, scoped, tag = 'input window, operand 3, single buffered']
    #allocation8 [shape = 'u8[131072]{0}', space=vmem, size = 0x20000, scoped, tag = 'input window, operand 5, single buffered']
    #allocation9 [shape = 's32[1]{0}', space=sflag, size = 0x4, scoped, tag = 'scoped memory for tpu_custom_call.1']
    #allocation10 [shape = 'u8[8192]{0}', space=vmem, size = 0x2000, scoped, tag = 'output window, operand 0, single buffered']
    %12 = vsyncpa [#allocation3], 0
    %13 = vsyncpa [#allocation6], 0
    %14 = vsyncpa [#allocation9], 0
    %15 = vsyncpa [#allocation4], 0
    // Predicated region
    $region2: #{tpu_custom_call.1} parent=1 // pred_check
      _
    $region3: #{tpu_custom_call.1} parent=1 // pred_check_branch
      %17 = sbr.rel (0) target = $region5
    $region4: #{tpu_custom_call.1} parent=1 // pred_region
      %s19 = ssub.s32 128, 128
      %20 = vsyncadd [#allocation3], %s19
      %s22 = sshll.u32 [#allocation2], 4
      %s23 = int_to_ptr.vmem [resolvable:$true] %s22
      %25 = dma.hbm_to_vmem [thread:$0]  %s0, 128, %s23, [#allocation3]
    $region5: #{tpu_custom_call.1} parent=1 // pred_fallthru
      _
    // Predicated region
    $region6: #{tpu_custom_call.1} parent=1 // pred_check
      _
    $region7: #{tpu_custom_call.1} parent=1 // pred_check_branch
      %27 = sbr.rel (0) target = $region9
    $region8: #{tpu_custom_call.1} parent=1 // pred_region
      %s29 = ssub.s32 2048, 2048
      %30 = vsyncadd [#allocation6], %s29
      %s31 = sshll.u32 [#allocation5], 4
      %s32 = int_to_ptr.vmem [resolvable:$true] %s31
      %37 = dma.hbm_to_vmem [thread:$0]  %s1, 2048, %s32, [#allocation6], 128, 128, 8
    $region9: #{tpu_custom_call.1} parent=1 // pred_fallthru
      _
    // Predicated region
    $region10: #{tpu_custom_call.1} parent=1 // pred_check
      _
    $region11: #{tpu_custom_call.1} parent=1 // pred_check_branch
      %39 = sbr.rel (0) target = $region13
    $region12: #{tpu_custom_call.1} parent=1 // pred_region
      _
    $region13: #{tpu_custom_call.1} parent=1 // pred_fallthru
      _
    // Predicated region
    $region14: #{tpu_custom_call.1} parent=1 // pred_check
      _
    $region15: #{tpu_custom_call.1} parent=1 // pred_check_branch
      %41 = sbr.rel (0) target = $region17
    $region16: #{tpu_custom_call.1} parent=1 // pred_region
      %s43 = ssub.s32 4096, 4096
      %44 = vsyncadd [#allocation6], %s43
      %s45 = sshll.u32 [#allocation7], 4
      %s46 = int_to_ptr.vmem [resolvable:$true] %s45
      %51 = dma.hbm_to_vmem [thread:$0]  %s3, 4096, %s46, [#allocation6], 128, 128, 8
    $region17: #{tpu_custom_call.1} parent=1 // pred_fallthru
      _
    // Predicated region
    $region18: #{tpu_custom_call.1} parent=1 // pred_check
      _
    $region19: #{tpu_custom_call.1} parent=1 // pred_check_branch
      %53 = sbr.rel (0) target = $region21
    $region20: #{tpu_custom_call.1} parent=1 // pred_region
      _
    $region21: #{tpu_custom_call.1} parent=1 // pred_fallthru
      _
    // Predicated region
    $region22: #{tpu_custom_call.1} parent=1 // pred_check
      _
    $region23: #{tpu_custom_call.1} parent=1 // pred_check_branch
      %55 = sbr.rel (0) target = $region25
    $region24: #{tpu_custom_call.1} parent=1 // pred_region
      %s57 = ssub.s32 4096, 4096
      %58 = vsyncadd [#allocation9], %s57
      %s59 = sshll.u32 [#allocation8], 4
      %s60 = int_to_ptr.vmem [resolvable:$true] %s59
      %65 = dma.hbm_to_vmem [thread:$0]  %s5, 4096, %s60, [#allocation9], 128, 128, 8
    $region25: #{tpu_custom_call.1} parent=1 // pred_fallthru
      _
    // Predicated region
    $region26: #{tpu_custom_call.1} parent=1 // pred_check
      _
    $region27: #{tpu_custom_call.1} parent=1 // pred_check_branch
      %67 = sbr.rel (0) target = $region29
    $region28: #{tpu_custom_call.1} parent=1 // pred_region
      _
    $region29: #{tpu_custom_call.1} parent=1 // pred_fallthru
      _
    // Predicated region
    $region30: #{tpu_custom_call.1} parent=1 // pred_check
      _
    $region31: #{tpu_custom_call.1} parent=1 // pred_check_branch
      %69 = sbr.rel (0) target = $region33
    $region32: #{tpu_custom_call.1} parent=1 // pred_region
      %70 = dma.done [#allocation3], 128
    $region33: #{tpu_custom_call.1} parent=1 // pred_fallthru
      _
    // Predicated region
    $region34: #{tpu_custom_call.1} parent=1 // pred_check
      _
    $region35: #{tpu_custom_call.1} parent=1 // pred_check_branch
      %72 = sbr.rel (0) target = $region37
    $region36: #{tpu_custom_call.1} parent=1 // pred_region
      %73 = dma.done [#allocation6], 2048
    $region37: #{tpu_custom_call.1} parent=1 // pred_fallthru
      _
    // Predicated region
    $region38: #{tpu_custom_call.1} parent=1 // pred_check
      _
    $region39: #{tpu_custom_call.1} parent=1 // pred_check_branch
      %75 = sbr.rel (0) target = $region41
    $region40: #{tpu_custom_call.1} parent=1 // pred_region
      %76 = dma.done [#allocation6], 4096
    $region41: #{tpu_custom_call.1} parent=1 // pred_fallthru
      _
    // Predicated region
    $region42: #{tpu_custom_call.1} parent=1 // pred_check
      _
    $region43: #{tpu_custom_call.1} parent=1 // pred_check_branch
      %78 = sbr.rel (0) target = $region45
    $region44: #{tpu_custom_call.1} parent=1 // pred_region
      %79 = dma.done [#allocation9], 4096
    $region45: #{tpu_custom_call.1} parent=1 // pred_fallthru
      _
    %v81 = vld [vmem:[#allocation2] sm:$0xff]
    %v82 = vpack.c.bf16 %v81, %v81
    %v83 = vld [vmem:[#allocation5] sm:$0xff]
    %v84 = vld [vmem:[#allocation5 + $0x8] sm:$0xff]
    %v85 = vld [vmem:[#allocation5 + $0x10] sm:$0xff]
    %v86 = vld [vmem:[#allocation5 + $0x18] sm:$0xff]
    %v87 = vld [vmem:[#allocation5 + $0x20] sm:$0xff]
    %v88 = vld [vmem:[#allocation5 + $0x28] sm:$0xff]
    %v89 = vld [vmem:[#allocation5 + $0x30] sm:$0xff]
    %v90 = vld [vmem:[#allocation5 + $0x38] sm:$0xff]
    %v91 = vld [vmem:[#allocation5 + $0x40] sm:$0xff]
    %v92 = vld [vmem:[#allocation5 + $0x48] sm:$0xff]
    %v93 = vld [vmem:[#allocation5 + $0x50] sm:$0xff]
    %v94 = vld [vmem:[#allocation5 + $0x58] sm:$0xff]
    %v95 = vld [vmem:[#allocation5 + $0x60] sm:$0xff]
    %v96 = vld [vmem:[#allocation5 + $0x68] sm:$0xff]
    %v97 = vld [vmem:[#allocation5 + $0x70] sm:$0xff]
    %v98 = vld [vmem:[#allocation5 + $0x78] sm:$0xff]
    %v99 = vld [vmem:[%s2] sm:$0x3]
    %v101 = vlaneseq
    %v102 = vshrl.u32 %v101, 7
    %v103 = vsub.s32 0, %v102
    %v104 = vrot.slane %v99, %v103
    %v105 = vlaneseq
    %v106 = vshrl.u32 %v105, 7
    %v107 = vsub.s32 1, %v106
    %v108 = vrot.slane %v99, %v107
    %v127 = vunpack.c.l.b16 %v83
    %v128 = vunpack.c.h.b16 %v83
    %v129 = vunpack.c.l.b16 %v84
    %v130 = vunpack.c.h.b16 %v84
    %v131 = vunpack.c.l.b16 %v85
    %v132 = vunpack.c.h.b16 %v85
    %v133 = vunpack.c.l.b16 %v86
    %v134 = vunpack.c.h.b16 %v86
    %v135 = vunpack.c.l.b16 %v87
    %v136 = vunpack.c.h.b16 %v87
    %v137 = vunpack.c.l.b16 %v88
    %v138 = vunpack.c.h.b16 %v88
    %v139 = vunpack.c.l.b16 %v89
    %v140 = vunpack.c.h.b16 %v89
    %v141 = vunpack.c.l.b16 %v90
    %v142 = vunpack.c.h.b16 %v90
    %v143 = vunpack.c.l.b16 %v91
    %v144 = vunpack.c.h.b16 %v91
    %v145 = vunpack.c.l.b16 %v92
    %v146 = vunpack.c.h.b16 %v92
    %v147 = vunpack.c.l.b16 %v93
    %v148 = vunpack.c.h.b16 %v93
    %v149 = vunpack.c.l.b16 %v94
    %v150 = vunpack.c.h.b16 %v94
    %v151 = vunpack.c.l.b16 %v95
    %v152 = vunpack.c.h.b16 %v95
    %v153 = vunpack.c.l.b16 %v96
    %v154 = vunpack.c.h.b16 %v96
    %v155 = vunpack.c.l.b16 %v97
    %v156 = vunpack.c.h.b16 %v97
    %v157 = vunpack.c.l.b16 %v98
    %v158 = vunpack.c.h.b16 %v98
    %v159 = vpack.c.b16 %v129, %v127
    %v160 = vpack.c.b16 %v130, %v128
    %v161 = vpack.c.b16 %v133, %v131
    %v162 = vpack.c.b16 %v134, %v132
    %v163 = vpack.c.b16 %v137, %v135
    %v164 = vpack.c.b16 %v138, %v136
    %v165 = vpack.c.b16 %v141, %v139
    %v166 = vpack.c.b16 %v142, %v140
    %v167 = vpack.c.b16 %v145, %v143
    %v168 = vpack.c.b16 %v146, %v144
    %v169 = vpack.c.b16 %v149, %v147
    %v170 = vpack.c.b16 %v150, %v148
    %v171 = vpack.c.b16 %v153, %v151
    %v172 = vpack.c.b16 %v154, %v152
    %v173 = vpack.c.b16 %v157, %v155
    %v174 = vpack.c.b16 %v158, %v156
    %191 = vmatprep.subr.bf16.mxu0 %v160
    %192 = vmatpush1.bf16.msra.mxu0 %v159
    %193 = vmatprep.subr.bf16.mxu0 %v162
    %194 = vmatpush1.bf16.msra.mxu0 %v161
    %195 = vmatprep.subr.bf16.mxu0 %v164
    %196 = vmatpush1.bf16.msra.mxu0 %v163
    %197 = vmatprep.subr.bf16.mxu0 %v166
    %198 = vmatpush1.bf16.msra.mxu0 %v165
    %199 = vmatprep.subr.bf16.mxu0 %v168
    %200 = vmatpush1.bf16.msra.mxu0 %v167
    %201 = vmatprep.subr.bf16.mxu0 %v170
    %202 = vmatpush1.bf16.msra.mxu0 %v169
    %203 = vmatprep.subr.bf16.mxu0 %v172
    %204 = vmatpush1.bf16.msra.mxu0 %v171
    %205 = vmatprep.subr.bf16.mxu0 %v174
    %206 = vmatpush1.bf16.msra.mxu0 %v173
    %207 = vmatprep.subr.bf16.mxu0 0
    %208 = vmatpush1.bf16.msra.mxu0 0
    %209 = vmatprep.subr.bf16.mxu0 0
    %210 = vmatpush1.bf16.msra.mxu0 0
    %211 = vmatprep.subr.bf16.mxu0 0
    %212 = vmatpush1.bf16.msra.mxu0 0
    %213 = vmatprep.subr.bf16.mxu0 0
    %214 = vmatpush1.bf16.msra.mxu0 0
    %215 = vmatprep.subr.bf16.mxu0 0
    %216 = vmatpush1.bf16.msra.mxu0 0
    %217 = vmatprep.subr.bf16.mxu0 0
    %218 = vmatpush1.bf16.msra.mxu0 0
    %219 = vmatprep.subr.bf16.mxu0 0
    %220 = vmatpush1.bf16.msra.mxu0 0
    %221 = vmatprep.subr.bf16.mxu0 0
    %222 = vmatpush1.bf16.msra.mxu0 0
    %223 = vmatprep.mubr.bf16.mxu0 0
    %224 = vmatmul.mubr.bf16.gmra.mrb[0].mxu0 %v82
    %v225 = vpop.f32.mrb[0].mxu0
    %v226 = vadd.f32 %v104, %v225
    %v227 = vpop.f32.mrb[0].mxu0
    %v228 = vadd.f32 %v108, %v227
    %v229 = vpop.f32.mrb[0].mxu0
    %v230 = vpop.f32.mrb[0].mxu0
    %231 = vdwg.mxu0
    %v232 = vmax.f32 %v226, 0.0
    %v233 = vmax.f32 %v228, 0.0
    %v234 = vpack.c.bf16 %v232, %v232
    %v235 = vpack.c.bf16 %v233, %v233
    %v236 = vld [vmem:[#allocation7] sm:$0xff]
    %v237 = vld [vmem:[#allocation7 + $0x8] sm:$0xff]
    %v238 = vld [vmem:[#allocation7 + $0x10] sm:$0xff]
    %v239 = vld [vmem:[#allocation7 + $0x18] sm:$0xff]
    %v240 = vld [vmem:[#allocation7 + $0x20] sm:$0xff]
    %v241 = vld [vmem:[#allocation7 + $0x28] sm:$0xff]
    %v242 = vld [vmem:[#allocation7 + $0x30] sm:$0xff]
    %v243 = vld [vmem:[#allocation7 + $0x38] sm:$0xff]
    %v244 = vld [vmem:[#allocation7 + $0x40] sm:$0xff]
    %v245 = vld [vmem:[#allocation7 + $0x48] sm:$0xff]
    %v246 = vld [vmem:[#allocation7 + $0x50] sm:$0xff]
    %v247 = vld [vmem:[#allocation7 + $0x58] sm:$0xff]
    %v248 = vld [vmem:[#allocation7 + $0x60] sm:$0xff]
    %v249 = vld [vmem:[#allocation7 + $0x68] sm:$0xff]
    %v250 = vld [vmem:[#allocation7 + $0x70] sm:$0xff]
    %v251 = vld [vmem:[#allocation7 + $0x78] sm:$0xff]
    %v252 = vld [vmem:[#allocation7 + $0x80] sm:$0xff]
    %v253 = vld [vmem:[#allocation7 + $0x88] sm:$0xff]
    %v254 = vld [vmem:[#allocation7 + $0x90] sm:$0xff]
    %v255 = vld [vmem:[#allocation7 + $0x98] sm:$0xff]
    %v256 = vld [vmem:[#allocation7 + $0xa0] sm:$0xff]
    %v257 = vld [vmem:[#allocation7 + $0xa8] sm:$0xff]
    %v258 = vld [vmem:[#allocation7 + $0xb0] sm:$0xff]
    %v259 = vld [vmem:[#allocation7 + $0xb8] sm:$0xff]
    %v260 = vld [vmem:[#allocation7 + $0xc0] sm:$0xff]
    %v261 = vld [vmem:[#allocation7 + $0xc8] sm:$0xff]
    %v262 = vld [vmem:[#allocation7 + $0xd0] sm:$0xff]
    %v263 = vld [vmem:[#allocation7 + $0xd8] sm:$0xff]
    %v264 = vld [vmem:[#allocation7 + $0xe0] sm:$0xff]
    %v265 = vld [vmem:[#allocation7 + $0xe8] sm:$0xff]
    %v266 = vld [vmem:[#allocation7 + $0xf0] sm:$0xff]
    %v267 = vld [vmem:[#allocation7 + $0xf8] sm:$0xff]
    %v268 = vld [vmem:[%s4] sm:$0x3]
    %v270 = vlaneseq
    %v271 = vshrl.u32 %v270, 7
    %v272 = vsub.s32 0, %v271
    %v273 = vrot.slane %v268, %v272
    %v274 = vlaneseq
    %v275 = vshrl.u32 %v274, 7
    %v276 = vsub.s32 1, %v275
    %v277 = vrot.slane %v268, %v276
    %v312 = vunpack.c.l.b16 %v236
    %v313 = vunpack.c.h.b16 %v236
    %v314 = vunpack.c.l.b16 %v237
    %v315 = vunpack.c.h.b16 %v237
    %v316 = vunpack.c.l.b16 %v238
    %v317 = vunpack.c.h.b16 %v238
    %v318 = vunpack.c.l.b16 %v239
    %v319 = vunpack.c.h.b16 %v239
    %v320 = vunpack.c.l.b16 %v240
    %v321 = vunpack.c.h.b16 %v240
    %v322 = vunpack.c.l.b16 %v241
    %v323 = vunpack.c.h.b16 %v241
    %v324 = vunpack.c.l.b16 %v242
    %v325 = vunpack.c.h.b16 %v242
    %v326 = vunpack.c.l.b16 %v243
    %v327 = vunpack.c.h.b16 %v243
    %v328 = vunpack.c.l.b16 %v244
    %v329 = vunpack.c.h.b16 %v244
    %v330 = vunpack.c.l.b16 %v245
    %v331 = vunpack.c.h.b16 %v245
    %v332 = vunpack.c.l.b16 %v246
    %v333 = vunpack.c.h.b16 %v246
    %v334 = vunpack.c.l.b16 %v247
    %v335 = vunpack.c.h.b16 %v247
    %v336 = vunpack.c.l.b16 %v248
    %v337 = vunpack.c.h.b16 %v248
    %v338 = vunpack.c.l.b16 %v249
    %v339 = vunpack.c.h.b16 %v249
    %v340 = vunpack.c.l.b16 %v250
    %v341 = vunpack.c.h.b16 %v250
    %v342 = vunpack.c.l.b16 %v251
    %v343 = vunpack.c.h.b16 %v251
    %v344 = vunpack.c.l.b16 %v252
    %v345 = vunpack.c.h.b16 %v252
    %v346 = vunpack.c.l.b16 %v253
    %v347 = vunpack.c.h.b16 %v253
    %v348 = vunpack.c.l.b16 %v254
    %v349 = vunpack.c.h.b16 %v254
    %v350 = vunpack.c.l.b16 %v255
    %v351 = vunpack.c.h.b16 %v255
    %v352 = vunpack.c.l.b16 %v256
    %v353 = vunpack.c.h.b16 %v256
    %v354 = vunpack.c.l.b16 %v257
    %v355 = vunpack.c.h.b16 %v257
    %v356 = vunpack.c.l.b16 %v258
    %v357 = vunpack.c.h.b16 %v258
    %v358 = vunpack.c.l.b16 %v259
    %v359 = vunpack.c.h.b16 %v259
    %v360 = vunpack.c.l.b16 %v260
    %v361 = vunpack.c.h.b16 %v260
    %v362 = vunpack.c.l.b16 %v261
    %v363 = vunpack.c.h.b16 %v261
    %v364 = vunpack.c.l.b16 %v262
    %v365 = vunpack.c.h.b16 %v262
    %v366 = vunpack.c.l.b16 %v263
    %v367 = vunpack.c.h.b16 %v263
    %v368 = vunpack.c.l.b16 %v264
    %v369 = vunpack.c.h.b16 %v264
    %v370 = vunpack.c.l.b16 %v265
    %v371 = vunpack.c.h.b16 %v265
    %v372 = vunpack.c.l.b16 %v266
    %v373 = vunpack.c.h.b16 %v266
    %v374 = vunpack.c.l.b16 %v267
    %v375 = vunpack.c.h.b16 %v267
    %v376 = vpack.c.b16 %v314, %v312
    %v377 = vpack.c.b16 %v315, %v313
    %v378 = vpack.c.b16 %v318, %v316
    %v379 = vpack.c.b16 %v319, %v317
    %v380 = vpack.c.b16 %v322, %v320
    %v381 = vpack.c.b16 %v323, %v321
    %v382 = vpack.c.b16 %v326, %v324
    %v383 = vpack.c.b16 %v327, %v325
    %v384 = vpack.c.b16 %v330, %v328
    %v385 = vpack.c.b16 %v331, %v329
    %v386 = vpack.c.b16 %v334, %v332
    %v387 = vpack.c.b16 %v335, %v333
    %v388 = vpack.c.b16 %v338, %v336
    %v389 = vpack.c.b16 %v339, %v337
    %v390 = vpack.c.b16 %v342, %v340
    %v391 = vpack.c.b16 %v343, %v341
    %v392 = vpack.c.b16 %v346, %v344
    %v393 = vpack.c.b16 %v347, %v345
    %v394 = vpack.c.b16 %v350, %v348
    %v395 = vpack.c.b16 %v351, %v349
    %v396 = vpack.c.b16 %v354, %v352
    %v397 = vpack.c.b16 %v355, %v353
    %v398 = vpack.c.b16 %v358, %v356
    %v399 = vpack.c.b16 %v359, %v357
    %v400 = vpack.c.b16 %v362, %v360
    %v401 = vpack.c.b16 %v363, %v361
    %v402 = vpack.c.b16 %v366, %v364
    %v403 = vpack.c.b16 %v367, %v365
    %v404 = vpack.c.b16 %v370, %v368
    %v405 = vpack.c.b16 %v371, %v369
    %v406 = vpack.c.b16 %v374, %v372
    %v407 = vpack.c.b16 %v375, %v373
    %440 = vmatprep.subr.bf16.mxu0 %v377
    %441 = vmatpush1.bf16.msra.mxu0 %v376
    %442 = vmatprep.subr.bf16.mxu0 %v379
    %443 = vmatpush1.bf16.msra.mxu0 %v378
    %444 = vmatprep.subr.bf16.mxu0 %v381
    %445 = vmatpush1.bf16.msra.mxu0 %v380
    %446 = vmatprep.subr.bf16.mxu0 %v383
    %447 = vmatpush1.bf16.msra.mxu0 %v382
    %448 = vmatprep.subr.bf16.mxu0 %v385
    %449 = vmatpush1.bf16.msra.mxu0 %v384
    %450 = vmatprep.subr.bf16.mxu0 %v387
    %451 = vmatpush1.bf16.msra.mxu0 %v386
    %452 = vmatprep.subr.bf16.mxu0 %v389
    %453 = vmatpush1.bf16.msra.mxu0 %v388
    %454 = vmatprep.subr.bf16.mxu0 %v391
    %455 = vmatpush1.bf16.msra.mxu0 %v390
    %456 = vmatprep.subr.bf16.mxu0 %v393
    %457 = vmatpush1.bf16.msra.mxu0 %v392
    %458 = vmatprep.subr.bf16.mxu0 %v395
    %459 = vmatpush1.bf16.msra.mxu0 %v394
    %460 = vmatprep.subr.bf16.mxu0 %v397
    %461 = vmatpush1.bf16.msra.mxu0 %v396
    %462 = vmatprep.subr.bf16.mxu0 %v399
    %463 = vmatpush1.bf16.msra.mxu0 %v398
    %464 = vmatprep.subr.bf16.mxu0 %v401
    %465 = vmatpush1.bf16.msra.mxu0 %v400
    %466 = vmatprep.subr.bf16.mxu0 %v403
    %467 = vmatpush1.bf16.msra.mxu0 %v402
    %468 = vmatprep.subr.bf16.mxu0 %v405
    %469 = vmatpush1.bf16.msra.mxu0 %v404
    %470 = vmatprep.subr.bf16.mxu0 %v407
    %471 = vmatpush1.bf16.msra.mxu0 %v406
    %472 = vmatprep.mubr.bf16.mxu0 %v235
    %473 = vmatmul.mubr.bf16.gmra.mrb[0].mxu0 %v234
    %v474 = vpop.f32.mrb[0].mxu0
    %v475 = vadd.f32 %v273, %v474
    %v476 = vpop.f32.mrb[0].mxu0
    %v477 = vadd.f32 %v277, %v476
    %v478 = vpop.f32.mrb[0].mxu0
    %v479 = vpop.f32.mrb[0].mxu0
    %480 = vdwg.mxu0
    %v481 = vmax.f32 %v475, 0.0
    %v482 = vmax.f32 %v477, 0.0
    %v483 = vpack.c.bf16 %v481, %v481
    %v484 = vpack.c.bf16 %v482, %v482
    %v485 = vld [vmem:[#allocation8] sm:$0xff]
    %v486 = vld [vmem:[#allocation8 + $0x8] sm:$0xff]
    %v487 = vld [vmem:[#allocation8 + $0x10] sm:$0xff]
    %v488 = vld [vmem:[#allocation8 + $0x18] sm:$0xff]
    %v489 = vld [vmem:[#allocation8 + $0x20] sm:$0xff]
    %v490 = vld [vmem:[#allocation8 + $0x28] sm:$0xff]
    %v491 = vld [vmem:[#allocation8 + $0x30] sm:$0xff]
    %v492 = vld [vmem:[#allocation8 + $0x38] sm:$0xff]
    %v493 = vld [vmem:[#allocation8 + $0x40] sm:$0xff]
    %v494 = vld [vmem:[#allocation8 + $0x48] sm:$0xff]
    %v495 = vld [vmem:[#allocation8 + $0x50] sm:$0xff]
    %v496 = vld [vmem:[#allocation8 + $0x58] sm:$0xff]
    %v497 = vld [vmem:[#allocation8 + $0x60] sm:$0xff]
    %v498 = vld [vmem:[#allocation8 + $0x68] sm:$0xff]
    %v499 = vld [vmem:[#allocation8 + $0x70] sm:$0xff]
    %v500 = vld [vmem:[#allocation8 + $0x78] sm:$0xff]
    %v501 = vld [vmem:[#allocation8 + $0x80] sm:$0xff]
    %v502 = vld [vmem:[#allocation8 + $0x88] sm:$0xff]
    %v503 = vld [vmem:[#allocation8 + $0x90] sm:$0xff]
    %v504 = vld [vmem:[#allocation8 + $0x98] sm:$0xff]
    %v505 = vld [vmem:[#allocation8 + $0xa0] sm:$0xff]
    %v506 = vld [vmem:[#allocation8 + $0xa8] sm:$0xff]
    %v507 = vld [vmem:[#allocation8 + $0xb0] sm:$0xff]
    %v508 = vld [vmem:[#allocation8 + $0xb8] sm:$0xff]
    %v509 = vld [vmem:[#allocation8 + $0xc0] sm:$0xff]
    %v510 = vld [vmem:[#allocation8 + $0xc8] sm:$0xff]
    %v511 = vld [vmem:[#allocation8 + $0xd0] sm:$0xff]
    %v512 = vld [vmem:[#allocation8 + $0xd8] sm:$0xff]
    %v513 = vld [vmem:[#allocation8 + $0xe0] sm:$0xff]
    %v514 = vld [vmem:[#allocation8 + $0xe8] sm:$0xff]
    %v515 = vld [vmem:[#allocation8 + $0xf0] sm:$0xff]
    %v516 = vld [vmem:[#allocation8 + $0xf8] sm:$0xff]
    %v517 = vld [vmem:[%s6] sm:$0x3]
    %v519 = vlaneseq
    %v520 = vshrl.u32 %v519, 7
    %v521 = vsub.s32 0, %v520
    %v522 = vrot.slane %v517, %v521
    %v523 = vlaneseq
    %v524 = vshrl.u32 %v523, 7
    %v525 = vsub.s32 1, %v524
    %v526 = vrot.slane %v517, %v525
    %v561 = vunpack.c.l.b16 %v485
    %v562 = vunpack.c.h.b16 %v485
    %v563 = vunpack.c.l.b16 %v486
    %v564 = vunpack.c.h.b16 %v486
    %v565 = vunpack.c.l.b16 %v487
    %v566 = vunpack.c.h.b16 %v487
    %v567 = vunpack.c.l.b16 %v488
    %v568 = vunpack.c.h.b16 %v488
    %v569 = vunpack.c.l.b16 %v489
    %v570 = vunpack.c.h.b16 %v489
    %v571 = vunpack.c.l.b16 %v490
    %v572 = vunpack.c.h.b16 %v490
    %v573 = vunpack.c.l.b16 %v491
    %v574 = vunpack.c.h.b16 %v491
    %v575 = vunpack.c.l.b16 %v492
    %v576 = vunpack.c.h.b16 %v492
    %v577 = vunpack.c.l.b16 %v493
    %v578 = vunpack.c.h.b16 %v493
    %v579 = vunpack.c.l.b16 %v494
    %v580 = vunpack.c.h.b16 %v494
    %v581 = vunpack.c.l.b16 %v495
    %v582 = vunpack.c.h.b16 %v495
    %v583 = vunpack.c.l.b16 %v496
    %v584 = vunpack.c.h.b16 %v496
    %v585 = vunpack.c.l.b16 %v497
    %v586 = vunpack.c.h.b16 %v497
    %v587 = vunpack.c.l.b16 %v498
    %v588 = vunpack.c.h.b16 %v498
    %v589 = vunpack.c.l.b16 %v499
    %v590 = vunpack.c.h.b16 %v499
    %v591 = vunpack.c.l.b16 %v500
    %v592 = vunpack.c.h.b16 %v500
    %v593 = vunpack.c.l.b16 %v501
    %v594 = vunpack.c.h.b16 %v501
    %v595 = vunpack.c.l.b16 %v502
    %v596 = vunpack.c.h.b16 %v502
    %v597 = vunpack.c.l.b16 %v503
    %v598 = vunpack.c.h.b16 %v503
    %v599 = vunpack.c.l.b16 %v504
    %v600 = vunpack.c.h.b16 %v504
    %v601 = vunpack.c.l.b16 %v505
    %v602 = vunpack.c.h.b16 %v505
    %v603 = vunpack.c.l.b16 %v506
    %v604 = vunpack.c.h.b16 %v506
    %v605 = vunpack.c.l.b16 %v507
    %v606 = vunpack.c.h.b16 %v507
    %v607 = vunpack.c.l.b16 %v508
    %v608 = vunpack.c.h.b16 %v508
    %v609 = vunpack.c.l.b16 %v509
    %v610 = vunpack.c.h.b16 %v509
    %v611 = vunpack.c.l.b16 %v510
    %v612 = vunpack.c.h.b16 %v510
    %v613 = vunpack.c.l.b16 %v511
    %v614 = vunpack.c.h.b16 %v511
    %v615 = vunpack.c.l.b16 %v512
    %v616 = vunpack.c.h.b16 %v512
    %v617 = vunpack.c.l.b16 %v513
    %v618 = vunpack.c.h.b16 %v513
    %v619 = vunpack.c.l.b16 %v514
    %v620 = vunpack.c.h.b16 %v514
    %v621 = vunpack.c.l.b16 %v515
    %v622 = vunpack.c.h.b16 %v515
    %v623 = vunpack.c.l.b16 %v516
    %v624 = vunpack.c.h.b16 %v516
    %v625 = vpack.c.b16 %v563, %v561
    %v626 = vpack.c.b16 %v564, %v562
    %v627 = vpack.c.b16 %v567, %v565
    %v628 = vpack.c.b16 %v568, %v566
    %v629 = vpack.c.b16 %v571, %v569
    %v630 = vpack.c.b16 %v572, %v570
    %v631 = vpack.c.b16 %v575, %v573
    %v632 = vpack.c.b16 %v576, %v574
    %v633 = vpack.c.b16 %v579, %v577
    %v634 = vpack.c.b16 %v580, %v578
    %v635 = vpack.c.b16 %v583, %v581
    %v636 = vpack.c.b16 %v584, %v582
    %v637 = vpack.c.b16 %v587, %v585
    %v638 = vpack.c.b16 %v588, %v586
    %v639 = vpack.c.b16 %v591, %v589
    %v640 = vpack.c.b16 %v592, %v590
    %v641 = vpack.c.b16 %v595, %v593
    %v642 = vpack.c.b16 %v596, %v594
    %v643 = vpack.c.b16 %v599, %v597
    %v644 = vpack.c.b16 %v600, %v598
    %v645 = vpack.c.b16 %v603, %v601
    %v646 = vpack.c.b16 %v604, %v602
    %v647 = vpack.c.b16 %v607, %v605
    %v648 = vpack.c.b16 %v608, %v606
    %v649 = vpack.c.b16 %v611, %v609
    %v650 = vpack.c.b16 %v612, %v610
    %v651 = vpack.c.b16 %v615, %v613
    %v652 = vpack.c.b16 %v616, %v614
    %v653 = vpack.c.b16 %v619, %v617
    %v654 = vpack.c.b16 %v620, %v618
    %v655 = vpack.c.b16 %v623, %v621
    %v656 = vpack.c.b16 %v624, %v622
    %689 = vmatprep.subr.bf16.mxu0 %v626
    %690 = vmatpush1.bf16.msra.mxu0 %v625
    %691 = vmatprep.subr.bf16.mxu0 %v628
    %692 = vmatpush1.bf16.msra.mxu0 %v627
    %693 = vmatprep.subr.bf16.mxu0 %v630
    %694 = vmatpush1.bf16.msra.mxu0 %v629
    %695 = vmatprep.subr.bf16.mxu0 %v632
    %696 = vmatpush1.bf16.msra.mxu0 %v631
    %697 = vmatprep.subr.bf16.mxu0 %v634
    %698 = vmatpush1.bf16.msra.mxu0 %v633
    %699 = vmatprep.subr.bf16.mxu0 %v636
    %700 = vmatpush1.bf16.msra.mxu0 %v635
    %701 = vmatprep.subr.bf16.mxu0 %v638
    %702 = vmatpush1.bf16.msra.mxu0 %v637
    %703 = vmatprep.subr.bf16.mxu0 %v640
    %704 = vmatpush1.bf16.msra.mxu0 %v639
    %705 = vmatprep.subr.bf16.mxu0 %v642
    %706 = vmatpush1.bf16.msra.mxu0 %v641
    %707 = vmatprep.subr.bf16.mxu0 %v644
    %708 = vmatpush1.bf16.msra.mxu0 %v643
    %709 = vmatprep.subr.bf16.mxu0 %v646
    %710 = vmatpush1.bf16.msra.mxu0 %v645
    %711 = vmatprep.subr.bf16.mxu0 %v648
    %712 = vmatpush1.bf16.msra.mxu0 %v647
    %713 = vmatprep.subr.bf16.mxu0 %v650
    %714 = vmatpush1.bf16.msra.mxu0 %v649
    %715 = vmatprep.subr.bf16.mxu0 %v652
    %716 = vmatpush1.bf16.msra.mxu0 %v651
    %717 = vmatprep.subr.bf16.mxu0 %v654
    %718 = vmatpush1.bf16.msra.mxu0 %v653
    %719 = vmatprep.subr.bf16.mxu0 %v656
    %720 = vmatpush1.bf16.msra.mxu0 %v655
    %721 = vmatprep.mubr.bf16.mxu0 %v484
    %722 = vmatmul.mubr.bf16.gmra.mrb[0].mxu0 %v483
    %v723 = vpop.f32.mrb[0].mxu0
    %v724 = vadd.f32 %v522, %v723
    %v725 = vpop.f32.mrb[0].mxu0
    %v726 = vadd.f32 %v526, %v725
    %v727 = vpop.f32.mrb[0].mxu0
    %v728 = vpop.f32.mrb[0].mxu0
    %729 = vdwg.mxu0
    %730 = vst [vmem:[#allocation10] sm:$0xff] %v724
    %731 = vst [vmem:[#allocation10 + $0x8] sm:$0xff] %v726
    // Predicated region
    $region46: #{tpu_custom_call.1} parent=1 // pred_check
      _
    $region47: #{tpu_custom_call.1} parent=1 // pred_check_branch
      %733 = sbr.rel (0) target = $region49
    $region48: #{tpu_custom_call.1} parent=1 // pred_region
      %s735 = ssub.s32 256, 256
      %736 = vsyncadd [#allocation4], %s735
      %s738 = sshll.u32 [#allocation10], 4
      %s739 = int_to_ptr.vmem [resolvable:$true] %s738
      %741 = dma.vmem_to_hbm [thread:$0]  %s739, 256, %s7, [#allocation4]
    $region49: #{tpu_custom_call.1} parent=1 // pred_fallthru
      _
    // Predicated region
    $region50: #{tpu_custom_call.1} parent=1 // pred_check
      _
    $region51: #{tpu_custom_call.1} parent=1 // pred_check_branch
      %743 = sbr.rel (0) target = $region53
    $region52: #{tpu_custom_call.1} parent=1 // pred_region
      %744 = dma.done [#allocation4], 256
    $region53: #{tpu_custom_call.1} parent=1 // pred_fallthru
      _
    %745 = vsyncpa [#allocation3], 1
    %746 = vsyncpa [#allocation6], 1
    %747 = vsyncpa [#allocation9], 1
    %748 = vsyncpa [#allocation4], 1

// kernel: tpu_custom_call.1
$region0: #{tpu_custom_call.1}
  #allocation0 [shape = 'u32[]', space=smem, size = 0x4, offset = 0x4, fixed_abs, tag = 'smem constant byte address 0x4 - core index']
  #allocation1 [shape = 'u32[144,128]{1,0:T(1,128)}', space=vmem, size = 0x12000, scoped, tag = 'internal scratch']
  %s0 = inlined_call_operand.hbm [shape: f32[8,128], index: 0, kind: input, shape index: {}]
  %s1 = inlined_call_operand.hbm [shape: bf16[128,256], index: 1, kind: input, shape index: {}]
  %s2 = inlined_call_operand.vmem [shape: f32[1,256], index: 2, kind: input, shape index: {}]
  %s3 = inlined_call_operand.hbm [shape: bf16[256,256], index: 3, kind: input, shape index: {}]
  %s4 = inlined_call_operand.vmem [shape: f32[1,256], index: 4, kind: input, shape index: {}]
  %s5 = inlined_call_operand.hbm [shape: bf16[256,256], index: 5, kind: input, shape index: {}]
  %s6 = inlined_call_operand.vmem [shape: f32[1,256], index: 6, kind: input, shape index: {}]
  %s7 = inlined_call_operand.hbm [shape: f32[8,256], index: 7, kind: output, shape index: {}]
  %s8 = sld [smem:[#allocation0]]
  $region54: #{tpu_custom_call.1} parent=0
    _
  %s10 = ssub.s32 1, %s8
  %s11 = scalar_select 0, %s10, %s8
  $region1: #{tpu_custom_call.1} parent=0
    #allocation2 [shape = 'u8[4096]{0}', space=vmem, size = 0x1000, scoped, tag = 'input window, operand 0, single buffered']
    #allocation3 [shape = 's32[1]{0}', space=sflag, size = 0x4, scoped, tag = 'scoped memory for tpu_custom_call.1']
    #allocation4 [shape = 's32[1]{0}', space=sflag, size = 0x4, scoped, tag = 'scoped memory for tpu_custom_call.1']
    #allocation5 [shape = 'u8[65536]{0}', space=vmem, size = 0x10000, scoped, tag = 'input window, operand 1, single buffered']
    #allocation6 [shape = 's32[1]{0}', space=sflag, size = 0x4, scoped, tag = 'scoped memory for tpu_custom_call.1']
    #allocation7 [shape = 'u8[131072]{0}', space=vmem, size = 0x20000, scoped, tag = 'input window, operand 3, single buffered']
    #allocation8 [shape = 'u8[131072]{0}', space=vmem, size = 0x20000, scoped, tag = 'input window, operand 5, single buffered']
    #allocation9 [shape = 's32[1]{0}', space=sflag, size = 0x4, scoped, tag = 'scoped memory for tpu_custom_call.1']
    #allocation10 [shape = 'u8[8192]{0}', space=vmem, size = 0x2000, scoped, tag = 'output window, operand 0, single buffered']
    %12 = vsyncpa [#allocation3], 0
    %13 = vsyncpa [#allocation6], 0
    %14 = vsyncpa [#allocation9], 0
    %15 = vsyncpa [#allocation4], 0
    // Predicated region
    $region2: #{tpu_custom_call.1} parent=1 // pred_check
      _
    $region3: #{tpu_custom_call.1} parent=1 // pred_check_branch
      %17 = sbr.rel (0) target = $region5
    $region4: #{tpu_custom_call.1} parent=1 // pred_region
      %s19 = ssub.s32 128, 128
      %20 = vsyncadd [#allocation3], %s19
      %s22 = sshll.u32 [#allocation2], 4
      %s23 = int_to_ptr.vmem [resolvable:$true] %s22
      %25 = dma.hbm_to_vmem [thread:$0]  %s0, 128, %s23, [#allocation3]
    $region5: #{tpu_custom_call.1} parent=1 // pred_fallthru
      _
    // Predicated region
    $region6: #{tpu_custom_call.1} parent=1 // pred_check
      _
    $region7: #{tpu_custom_call.1} parent=1 // pred_check_branch
      %27 = sbr.rel (0) target = $region9
    $region8: #{tpu_custom_call.1} parent=1 // pred_region
      %s29 = ssub.s32 2048, 2048
      %30 = vsyncadd [#allocation6], %s29
      %s31 = sshll.u32 [#allocation5], 4
      %s32 = int_to_ptr.vmem [resolvable:$true] %s31
      %37 = dma.hbm_to_vmem [thread:$0]  %s1, 2048, %s32, [#allocation6], 128, 128, 8
    $region9: #{tpu_custom_call.1} parent=1 // pred_fallthru
      _
    // Predicated region
    $region10: #{tpu_custom_call.1} parent=1 // pred_check
      _
    $region11: #{tpu_custom_call.1} parent=1 // pred_check_branch
      %39 = sbr.rel (0) target = $region13
    $region12: #{tpu_custom_call.1} parent=1 // pred_region
      _
    $region13: #{tpu_custom_call.1} parent=1 // pred_fallthru
      _
    // Predicated region
    $region14: #{tpu_custom_call.1} parent=1 // pred_check
      _
    $region15: #{tpu_custom_call.1} parent=1 // pred_check_branch
      %41 = sbr.rel (0) target = $region17
    $region16: #{tpu_custom_call.1} parent=1 // pred_region
      %s43 = ssub.s32 4096, 4096
      %44 = vsyncadd [#allocation6], %s43
      %s45 = sshll.u32 [#allocation7], 4
      %s46 = int_to_ptr.vmem [resolvable:$true] %s45
      %51 = dma.hbm_to_vmem [thread:$0]  %s3, 4096, %s46, [#allocation6], 128, 128, 8
    $region17: #{tpu_custom_call.1} parent=1 // pred_fallthru
      _
    // Predicated region
    $region18: #{tpu_custom_call.1} parent=1 // pred_check
      _
    $region19: #{tpu_custom_call.1} parent=1 // pred_check_branch
      %53 = sbr.rel (0) target = $region21
    $region20: #{tpu_custom_call.1} parent=1 // pred_region
      _
    $region21: #{tpu_custom_call.1} parent=1 // pred_fallthru
      _
    // Predicated region
    $region22: #{tpu_custom_call.1} parent=1 // pred_check
      _
    $region23: #{tpu_custom_call.1} parent=1 // pred_check_branch
      %55 = sbr.rel (0) target = $region25
    $region24: #{tpu_custom_call.1} parent=1 // pred_region
      %s57 = ssub.s32 4096, 4096
      %58 = vsyncadd [#allocation9], %s57
      %s59 = sshll.u32 [#allocation8], 4
      %s60 = int_to_ptr.vmem [resolvable:$true] %s59
      %65 = dma.hbm_to_vmem [thread:$0]  %s5, 4096, %s60, [#allocation9], 128, 128, 8
    $region25: #{tpu_custom_call.1} parent=1 // pred_fallthru
      _
    // Predicated region
    $region26: #{tpu_custom_call.1} parent=1 // pred_check
      _
    $region27: #{tpu_custom_call.1} parent=1 // pred_check_branch
      %67 = sbr.rel (0) target = $region29
    $region28: #{tpu_custom_call.1} parent=1 // pred_region
      _
    $region29: #{tpu_custom_call.1} parent=1 // pred_fallthru
      _
    // Predicated region
    $region30: #{tpu_custom_call.1} parent=1 // pred_check
      _
    $region31: #{tpu_custom_call.1} parent=1 // pred_check_branch
      %69 = sbr.rel (0) target = $region33
    $region32: #{tpu_custom_call.1} parent=1 // pred_region
      %70 = dma.done [#allocation3], 128
    $region33: #{tpu_custom_call.1} parent=1 // pred_fallthru
      _
    // Predicated region
    $region34: #{tpu_custom_call.1} parent=1 // pred_check
      _
    $region35: #{tpu_custom_call.1} parent=1 // pred_check_branch
      %72 = sbr.rel (0) target = $region37
    $region36: #{tpu_custom_call.1} parent=1 // pred_region
      %73 = dma.done [#allocation6], 2048
    $region37: #{tpu_custom_call.1} parent=1 // pred_fallthru
      _
    // Predicated region
    $region38: #{tpu_custom_call.1} parent=1 // pred_check
      _
    $region39: #{tpu_custom_call.1} parent=1 // pred_check_branch
      %75 = sbr.rel (0) target = $region41
    $region40: #{tpu_custom_call.1} parent=1 // pred_region
      %76 = dma.done [#allocation6], 4096
    $region41: #{tpu_custom_call.1} parent=1 // pred_fallthru
      _
    // Predicated region
    $region42: #{tpu_custom_call.1} parent=1 // pred_check
      _
    $region43: #{tpu_custom_call.1} parent=1 // pred_check_branch
      %78 = sbr.rel (0) target = $region45
    $region44: #{tpu_custom_call.1} parent=1 // pred_region
      %79 = dma.done [#allocation9], 4096
    $region45: #{tpu_custom_call.1} parent=1 // pred_fallthru
      _
    %v81 = vld [vmem:[#allocation2] sm:$0xff]
    %v82 = vpack.c.bf16 %v81, %v81
    %v83 = vld [vmem:[#allocation5] sm:$0xff]
    %v84 = vld [vmem:[#allocation5 + $0x8] sm:$0xff]
    %v85 = vld [vmem:[#allocation5 + $0x10] sm:$0xff]
    %v86 = vld [vmem:[#allocation5 + $0x18] sm:$0xff]
    %v87 = vld [vmem:[#allocation5 + $0x20] sm:$0xff]
    %v88 = vld [vmem:[#allocation5 + $0x28] sm:$0xff]
    %v89 = vld [vmem:[#allocation5 + $0x30] sm:$0xff]
    %v90 = vld [vmem:[#allocation5 + $0x38] sm:$0xff]
    %v91 = vld [vmem:[#allocation5 + $0x40] sm:$0xff]
    %v92 = vld [vmem:[#allocation5 + $0x48] sm:$0xff]
    %v93 = vld [vmem:[#allocation5 + $0x50] sm:$0xff]
    %v94 = vld [vmem:[#allocation5 + $0x58] sm:$0xff]
    %v95 = vld [vmem:[#allocation5 + $0x60] sm:$0xff]
    %v96 = vld [vmem:[#allocation5 + $0x68] sm:$0xff]
    %v97 = vld [vmem:[#allocation5 + $0x70] sm:$0xff]
    %v98 = vld [vmem:[#allocation5 + $0x78] sm:$0xff]
    %v99 = vld [vmem:[%s2] sm:$0x3]
    %v101 = vlaneseq
    %v102 = vshrl.u32 %v101, 7
    %v103 = vsub.s32 0, %v102
    %v104 = vrot.slane %v99, %v103
    %v105 = vlaneseq
    %v106 = vshrl.u32 %v105, 7
    %v107 = vsub.s32 1, %v106
    %v108 = vrot.slane %v99, %v107
    %v127 = vunpack.c.l.b16 %v83
    %v128 = vunpack.c.h.b16 %v83
    %v129 = vunpack.c.l.b16 %v84
    %v130 = vunpack.c.h.b16 %v84
    %v131 = vunpack.c.l.b16 %v85
    %v132 = vunpack.c.h.b16 %v85
    %v133 = vunpack.c.l.b16 %v86
    %v134 = vunpack.c.h.b16 %v86
    %v135 = vunpack.c.l.b16 %v87
    %v136 = vunpack.c.h.b16 %v87
    %v137 = vunpack.c.l.b16 %v88
    %v138 = vunpack.c.h.b16 %v88
    %v139 = vunpack.c.l.b16 %v89
    %v140 = vunpack.c.h.b16 %v89
    %v141 = vunpack.c.l.b16 %v90
    %v142 = vunpack.c.h.b16 %v90
    %v143 = vunpack.c.l.b16 %v91
    %v144 = vunpack.c.h.b16 %v91
    %v145 = vunpack.c.l.b16 %v92
    %v146 = vunpack.c.h.b16 %v92
    %v147 = vunpack.c.l.b16 %v93
    %v148 = vunpack.c.h.b16 %v93
    %v149 = vunpack.c.l.b16 %v94
    %v150 = vunpack.c.h.b16 %v94
    %v151 = vunpack.c.l.b16 %v95
    %v152 = vunpack.c.h.b16 %v95
    %v153 = vunpack.c.l.b16 %v96
    %v154 = vunpack.c.h.b16 %v96
    %v155 = vunpack.c.l.b16 %v97
    %v156 = vunpack.c.h.b16 %v97
    %v157 = vunpack.c.l.b16 %v98
    %v158 = vunpack.c.h.b16 %v98
    %v159 = vpack.c.b16 %v129, %v127
    %v160 = vpack.c.b16 %v130, %v128
    %v161 = vpack.c.b16 %v133, %v131
    %v162 = vpack.c.b16 %v134, %v132
    %v163 = vpack.c.b16 %v137, %v135
    %v164 = vpack.c.b16 %v138, %v136
    %v165 = vpack.c.b16 %v141, %v139
    %v166 = vpack.c.b16 %v142, %v140
    %v167 = vpack.c.b16 %v145, %v143
    %v168 = vpack.c.b16 %v146, %v144
    %v169 = vpack.c.b16 %v149, %v147
    %v170 = vpack.c.b16 %v150, %v148
    %v171 = vpack.c.b16 %v153, %v151
    %v172 = vpack.c.b16 %v154, %v152
    %v173 = vpack.c.b16 %v157, %v155
    %v174 = vpack.c.b16 %v158, %v156
    %191 = vmatprep.subr.bf16.mxu0 %v160
    %192 = vmatpush1.bf16.msra.mxu0 %v159
    %193 = vmatprep.subr.bf16.mxu0 %v162
    %194 = vmatpush1.bf16.msra.mxu0 %v161
    %195 = vmatprep.subr.bf16.mxu0 %v164
    %196 = vmatpush1.bf16.msra.mxu0 %v163
    %197 = vmatprep.subr.bf16.mxu0 %v166
    %198 = vmatpush1.bf16.msra.mxu0 %v165
    %199 = vmatprep.subr.bf16.mxu0 %v168
    %200 = vmatpush1.bf16.msra.mxu0 %v167
    %201 = vmatprep.subr.bf16.mxu0 %v170
    %202 = vmatpush1.bf16.msra.mxu0 %v169
    %203 = vmatprep.subr.bf16.mxu0 %v172
    %204 = vmatpush1.bf16.msra.mxu0 %v171
    %205 = vmatprep.subr.bf16.mxu0 %v174
    %206 = vmatpush1.bf16.msra.mxu0 %v173
    %207 = vmatprep.subr.bf16.mxu0 0
    %208 = vmatpush1.bf16.msra.mxu0 0
    %209 = vmatprep.subr.bf16.mxu0 0
    %210 = vmatpush1.bf16.msra.mxu0 0
    %211 = vmatprep.subr.bf16.mxu0 0
    %212 = vmatpush1.bf16.msra.mxu0 0
    %213 = vmatprep.subr.bf16.mxu0 0
    %214 = vmatpush1.bf16.msra.mxu0 0
    %215 = vmatprep.subr.bf16.mxu0 0
    %216 = vmatpush1.bf16.msra.mxu0 0
    %217 = vmatprep.subr.bf16.mxu0 0
    %218 = vmatpush1.bf16.msra.mxu0 0
    %219 = vmatprep.subr.bf16.mxu0 0
    %220 = vmatpush1.bf16.msra.mxu0 0
    %221 = vmatprep.subr.bf16.mxu0 0
    %222 = vmatpush1.bf16.msra.mxu0 0
    %223 = vmatprep.mubr.bf16.mxu0 0
    %224 = vmatmul.mubr.bf16.gmra.mrb[0].mxu0 %v82
    %v225 = vpop.f32.mrb[0].mxu0
    %v226 = vadd.f32 %v104, %v225
    %v227 = vpop.f32.mrb[0].mxu0
    %v228 = vadd.f32 %v108, %v227
    %v229 = vpop.f32.mrb[0].mxu0
    %v230 = vpop.f32.mrb[0].mxu0
    %231 = vdwg.mxu0
    %v232 = vmax.f32 %v226, 0.0
    %v233 = vmax.f32 %v228, 0.0
    %v234 = vpack.c.bf16 %v232, %v232
    %v235 = vpack.c.bf16 %v233, %v233
    %v236 = vld [vmem:[#allocation7] sm:$0xff]
    %v237 = vld [vmem:[#allocation7 + $0x8] sm:$0xff]
    %v238 = vld [vmem:[#allocation7 + $0x10] sm:$0xff]
    %v239 = vld [vmem:[#allocation7 + $0x18] sm:$0xff]
    %v240 = vld [vmem:[#allocation7 + $0x20] sm:$0xff]
    %v241 = vld [vmem:[#allocation7 + $0x28] sm:$0xff]
    %v242 = vld [vmem:[#allocation7 + $0x30] sm:$0xff]
    %v243 = vld [vmem:[#allocation7 + $0x38] sm:$0xff]
    %v244 = vld [vmem:[#allocation7 + $0x40] sm:$0xff]
    %v245 = vld [vmem:[#allocation7 + $0x48] sm:$0xff]
    %v246 = vld [vmem:[#allocation7 + $0x50] sm:$0xff]
    %v247 = vld [vmem:[#allocation7 + $0x58] sm:$0xff]
    %v248 = vld [vmem:[#allocation7 + $0x60] sm:$0xff]
    %v249 = vld [vmem:[#allocation7 + $0x68] sm:$0xff]
    %v250 = vld [vmem:[#allocation7 + $0x70] sm:$0xff]
    %v251 = vld [vmem:[#allocation7 + $0x78] sm:$0xff]
    %v252 = vld [vmem:[#allocation7 + $0x80] sm:$0xff]
    %v253 = vld [vmem:[#allocation7 + $0x88] sm:$0xff]
    %v254 = vld [vmem:[#allocation7 + $0x90] sm:$0xff]
    %v255 = vld [vmem:[#allocation7 + $0x98] sm:$0xff]
    %v256 = vld [vmem:[#allocation7 + $0xa0] sm:$0xff]
    %v257 = vld [vmem:[#allocation7 + $0xa8] sm:$0xff]
    %v258 = vld [vmem:[#allocation7 + $0xb0] sm:$0xff]
    %v259 = vld [vmem:[#allocation7 + $0xb8] sm:$0xff]
    %v260 = vld [vmem:[#allocation7 + $0xc0] sm:$0xff]
    %v261 = vld [vmem:[#allocation7 + $0xc8] sm:$0xff]
    %v262 = vld [vmem:[#allocation7 + $0xd0] sm:$0xff]
    %v263 = vld [vmem:[#allocation7 + $0xd8] sm:$0xff]
    %v264 = vld [vmem:[#allocation7 + $0xe0] sm:$0xff]
    %v265 = vld [vmem:[#allocation7 + $0xe8] sm:$0xff]
    %v266 = vld [vmem:[#allocation7 + $0xf0] sm:$0xff]
    %v267 = vld [vmem:[#allocation7 + $0xf8] sm:$0xff]
    %v268 = vld [vmem:[%s4] sm:$0x3]
    %v270 = vlaneseq
    %v271 = vshrl.u32 %v270, 7
    %v272 = vsub.s32 0, %v271
    %v273 = vrot.slane %v268, %v272
    %v274 = vlaneseq
    %v275 = vshrl.u32 %v274, 7
    %v276 = vsub.s32 1, %v275
    %v277 = vrot.slane %v268, %v276
    %v312 = vunpack.c.l.b16 %v236
    %v313 = vunpack.c.h.b16 %v236
    %v314 = vunpack.c.l.b16 %v237
    %v315 = vunpack.c.h.b16 %v237
    %v316 = vunpack.c.l.b16 %v238
    %v317 = vunpack.c.h.b16 %v238
    %v318 = vunpack.c.l.b16 %v239
    %v319 = vunpack.c.h.b16 %v239
    %v320 = vunpack.c.l.b16 %v240
    %v321 = vunpack.c.h.b16 %v240
    %v322 = vunpack.c.l.b16 %v241
    %v323 = vunpack.c.h.b16 %v241
    %v324 = vunpack.c.l.b16 %v242
    %v325 = vunpack.c.h.b16 %v242
    %v326 = vunpack.c.l.b16 %v243
    %v327 = vunpack.c.h.b16 %v243
    %v328 = vunpack.c.l.b16 %v244
    %v329 = vunpack.c.h.b16 %v244
    %v330 = vunpack.c.l.b16 %v245
    %v331 = vunpack.c.h.b16 %v245
    %v332 = vunpack.c.l.b16 %v246
    %v333 = vunpack.c.h.b16 %v246
    %v334 = vunpack.c.l.b16 %v247
    %v335 = vunpack.c.h.b16 %v247
    %v336 = vunpack.c.l.b16 %v248
    %v337 = vunpack.c.h.b16 %v248
    %v338 = vunpack.c.l.b16 %v249
    %v339 = vunpack.c.h.b16 %v249
    %v340 = vunpack.c.l.b16 %v250
    %v341 = vunpack.c.h.b16 %v250
    %v342 = vunpack.c.l.b16 %v251
    %v343 = vunpack.c.h.b16 %v251
    %v344 = vunpack.c.l.b16 %v252
    %v345 = vunpack.c.h.b16 %v252
    %v346 = vunpack.c.l.b16 %v253
    %v347 = vunpack.c.h.b16 %v253
    %v348 = vunpack.c.l.b16 %v254
    %v349 = vunpack.c.h.b16 %v254
    %v350 = vunpack.c.l.b16 %v255
    %v351 = vunpack.c.h.b16 %v255
    %v352 = vunpack.c.l.b16 %v256
    %v353 = vunpack.c.h.b16 %v256
    %v354 = vunpack.c.l.b16 %v257
    %v355 = vunpack.c.h.b16 %v257
    %v356 = vunpack.c.l.b16 %v258
    %v357 = vunpack.c.h.b16 %v258
    %v358 = vunpack.c.l.b16 %v259
    %v359 = vunpack.c.h.b16 %v259
    %v360 = vunpack.c.l.b16 %v260
    %v361 = vunpack.c.h.b16 %v260
    %v362 = vunpack.c.l.b16 %v261
    %v363 = vunpack.c.h.b16 %v261
    %v364 = vunpack.c.l.b16 %v262
    %v365 = vunpack.c.h.b16 %v262
    %v366 = vunpack.c.l.b16 %v263
    %v367 = vunpack.c.h.b16 %v263
    %v368 = vunpack.c.l.b16 %v264
    %v369 = vunpack.c.h.b16 %v264
    %v370 = vunpack.c.l.b16 %v265
    %v371 = vunpack.c.h.b16 %v265
    %v372 = vunpack.c.l.b16 %v266
    %v373 = vunpack.c.h.b16 %v266
    %v374 = vunpack.c.l.b16 %v267
    %v375 = vunpack.c.h.b16 %v267
    %v376 = vpack.c.b16 %v314, %v312
    %v377 = vpack.c.b16 %v315, %v313
    %v378 = vpack.c.b16 %v318, %v316
    %v379 = vpack.c.b16 %v319, %v317
    %v380 = vpack.c.b16 %v322, %v320
    %v381 = vpack.c.b16 %v323, %v321
    %v382 = vpack.c.b16 %v326, %v324
    %v383 = vpack.c.b16 %v327, %v325
    %v384 = vpack.c.b16 %v330, %v328
    %v385 = vpack.c.b16 %v331, %v329
    %v386 = vpack.c.b16 %v334, %v332
    %v387 = vpack.c.b16 %v335, %v333
    %v388 = vpack.c.b16 %v338, %v336
    %v389 = vpack.c.b16 %v339, %v337
    %v390 = vpack.c.b16 %v342, %v340
    %v391 = vpack.c.b16 %v343, %v341
    %v392 = vpack.c.b16 %v346, %v344
    %v393 = vpack.c.b16 %v347, %v345
    %v394 = vpack.c.b16 %v350, %v348
    %v395 = vpack.c.b16 %v351, %v349
    %v396 = vpack.c.b16 %v354, %v352
    %v397 = vpack.c.b16 %v355, %v353
    %v398 = vpack.c.b16 %v358, %v356
    %v399 = vpack.c.b16 %v359, %v357
    %v400 = vpack.c.b16 %v362, %v360
    %v401 = vpack.c.b16 %v363, %v361
    %v402 = vpack.c.b16 %v366, %v364
    %v403 = vpack.c.b16 %v367, %v365
    %v404 = vpack.c.b16 %v370, %v368
    %v405 = vpack.c.b16 %v371, %v369
    %v406 = vpack.c.b16 %v374, %v372
    %v407 = vpack.c.b16 %v375, %v373
    %440 = vmatprep.subr.bf16.mxu0 %v377
    %441 = vmatpush1.bf16.msra.mxu0 %v376
    %442 = vmatprep.subr.bf16.mxu0 %v379
    %443 = vmatpush1.bf16.msra.mxu0 %v378
    %444 = vmatprep.subr.bf16.mxu0 %v381
    %445 = vmatpush1.bf16.msra.mxu0 %v380
    %446 = vmatprep.subr.bf16.mxu0 %v383
    %447 = vmatpush1.bf16.msra.mxu0 %v382
    %448 = vmatprep.subr.bf16.mxu0 %v385
    %449 = vmatpush1.bf16.msra.mxu0 %v384
    %450 = vmatprep.subr.bf16.mxu0 %v387
    %451 = vmatpush1.bf16.msra.mxu0 %v386
    %452 = vmatprep.subr.bf16.mxu0 %v389
    %453 = vmatpush1.bf16.msra.mxu0 %v388
    %454 = vmatprep.subr.bf16.mxu0 %v391
    %455 = vmatpush1.bf16.msra.mxu0 %v390
    %456 = vmatprep.subr.bf16.mxu0 %v393
    %457 = vmatpush1.bf16.msra.mxu0 %v392
    %458 = vmatprep.subr.bf16.mxu0 %v395
    %459 = vmatpush1.bf16.msra.mxu0 %v394
    %460 = vmatprep.subr.bf16.mxu0 %v397
    %461 = vmatpush1.bf16.msra.mxu0 %v396
    %462 = vmatprep.subr.bf16.mxu0 %v399
    %463 = vmatpush1.bf16.msra.mxu0 %v398
    %464 = vmatprep.subr.bf16.mxu0 %v401
    %465 = vmatpush1.bf16.msra.mxu0 %v400
    %466 = vmatprep.subr.bf16.mxu0 %v403
    %467 = vmatpush1.bf16.msra.mxu0 %v402
    %468 = vmatprep.subr.bf16.mxu0 %v405
    %469 = vmatpush1.bf16.msra.mxu0 %v404
    %470 = vmatprep.subr.bf16.mxu0 %v407
    %471 = vmatpush1.bf16.msra.mxu0 %v406
    %472 = vmatprep.mubr.bf16.mxu0 %v235
    %473 = vmatmul.mubr.bf16.gmra.mrb[0].mxu0 %v234
    %v474 = vpop.f32.mrb[0].mxu0
    %v475 = vadd.f32 %v273, %v474
    %v476 = vpop.f32.mrb[0].mxu0
    %v477 = vadd.f32 %v277, %v476
    %v478 = vpop.f32.mrb[0].mxu0
    %v479 = vpop.f32.mrb[0].mxu0
    %480 = vdwg.mxu0
    %v481 = vmax.f32 %v475, 0.0
    %v482 = vmax.f32 %v477, 0.0
    %v483 = vpack.c.bf16 %v481, %v481
    %v484 = vpack.c.bf16 %v482, %v482
    %v485 = vld [vmem:[#allocation8] sm:$0xff]
    %v486 = vld [vmem:[#allocation8 + $0x8] sm:$0xff]
    %v487 = vld [vmem:[#allocation8 + $0x10] sm:$0xff]
    %v488 = vld [vmem:[#allocation8 + $0x18] sm:$0xff]
    %v489 = vld [vmem:[#allocation8 + $0x20] sm:$0xff]
    %v490 = vld [vmem:[#allocation8 + $0x28] sm:$0xff]
    %v491 = vld [vmem:[#allocation8 + $0x30] sm:$0xff]
    %v492 = vld [vmem:[#allocation8 + $0x38] sm:$0xff]
    %v493 = vld [vmem:[#allocation8 + $0x40] sm:$0xff]
    %v494 = vld [vmem:[#allocation8 + $0x48] sm:$0xff]
    %v495 = vld [vmem:[#allocation8 + $0x50] sm:$0xff]
    %v496 = vld [vmem:[#allocation8 + $0x58] sm:$0xff]
    %v497 = vld [vmem:[#allocation8 + $0x60] sm:$0xff]
    %v498 = vld [vmem:[#allocation8 + $0x68] sm:$0xff]
    %v499 = vld [vmem:[#allocation8 + $0x70] sm:$0xff]
    %v500 = vld [vmem:[#allocation8 + $0x78] sm:$0xff]
    %v501 = vld [vmem:[#allocation8 + $0x80] sm:$0xff]
    %v502 = vld [vmem:[#allocation8 + $0x88] sm:$0xff]
    %v503 = vld [vmem:[#allocation8 + $0x90] sm:$0xff]
    %v504 = vld [vmem:[#allocation8 + $0x98] sm:$0xff]
    %v505 = vld [vmem:[#allocation8 + $0xa0] sm:$0xff]
    %v506 = vld [vmem:[#allocation8 + $0xa8] sm:$0xff]
    %v507 = vld [vmem:[#allocation8 + $0xb0] sm:$0xff]
    %v508 = vld [vmem:[#allocation8 + $0xb8] sm:$0xff]
    %v509 = vld [vmem:[#allocation8 + $0xc0] sm:$0xff]
    %v510 = vld [vmem:[#allocation8 + $0xc8] sm:$0xff]
    %v511 = vld [vmem:[#allocation8 + $0xd0] sm:$0xff]
    %v512 = vld [vmem:[#allocation8 + $0xd8] sm:$0xff]
    %v513 = vld [vmem:[#allocation8 + $0xe0] sm:$0xff]
    %v514 = vld [vmem:[#allocation8 + $0xe8] sm:$0xff]
    %v515 = vld [vmem:[#allocation8 + $0xf0] sm:$0xff]
    %v516 = vld [vmem:[#allocation8 + $0xf8] sm:$0xff]
    %v517 = vld [vmem:[%s6] sm:$0x3]
    %v519 = vlaneseq
    %v520 = vshrl.u32 %v519, 7
    %v521 = vsub.s32 0, %v520
    %v522 = vrot.slane %v517, %v521
    %v523 = vlaneseq
    %v524 = vshrl.u32 %v523, 7
    %v525 = vsub.s32 1, %v524
    %v526 = vrot.slane %v517, %v525
    %v561 = vunpack.c.l.b16 %v485
    %v562 = vunpack.c.h.b16 %v485
    %v563 = vunpack.c.l.b16 %v486
    %v564 = vunpack.c.h.b16 %v486
    %v565 = vunpack.c.l.b16 %v487
    %v566 = vunpack.c.h.b16 %v487
    %v567 = vunpack.c.l.b16 %v488
    %v568 = vunpack.c.h.b16 %v488
    %v569 = vunpack.c.l.b16 %v489
    %v570 = vunpack.c.h.b16 %v489
    %v571 = vunpack.c.l.b16 %v490
    %v572 = vunpack.c.h.b16 %v490
    %v573 = vunpack.c.l.b16 %v491
    %v574 = vunpack.c.h.b16 %v491
    %v575 = vunpack.c.l.b16 %v492
    %v576 = vunpack.c.h.b16 %v492
    %v577 = vunpack.c.l.b16 %v493
    %v578 = vunpack.c.h.b16 %v493
    %v579 = vunpack.c.l.b16 %v494
    %v580 = vunpack.c.h.b16 %v494
    %v581 = vunpack.c.l.b16 %v495
    %v582 = vunpack.c.h.b16 %v495
    %v583 = vunpack.c.l.b16 %v496
    %v584 = vunpack.c.h.b16 %v496
    %v585 = vunpack.c.l.b16 %v497
    %v586 = vunpack.c.h.b16 %v497
    %v587 = vunpack.c.l.b16 %v498
    %v588 = vunpack.c.h.b16 %v498
    %v589 = vunpack.c.l.b16 %v499
    %v590 = vunpack.c.h.b16 %v499
    %v591 = vunpack.c.l.b16 %v500
    %v592 = vunpack.c.h.b16 %v500
    %v593 = vunpack.c.l.b16 %v501
    %v594 = vunpack.c.h.b16 %v501
    %v595 = vunpack.c.l.b16 %v502
    %v596 = vunpack.c.h.b16 %v502
    %v597 = vunpack.c.l.b16 %v503
    %v598 = vunpack.c.h.b16 %v503
    %v599 = vunpack.c.l.b16 %v504
    %v600 = vunpack.c.h.b16 %v504
    %v601 = vunpack.c.l.b16 %v505
    %v602 = vunpack.c.h.b16 %v505
    %v603 = vunpack.c.l.b16 %v506
    %v604 = vunpack.c.h.b16 %v506
    %v605 = vunpack.c.l.b16 %v507
    %v606 = vunpack.c.h.b16 %v507
    %v607 = vunpack.c.l.b16 %v508
    %v608 = vunpack.c.h.b16 %v508
    %v609 = vunpack.c.l.b16 %v509
    %v610 = vunpack.c.h.b16 %v509
    %v611 = vunpack.c.l.b16 %v510
    %v612 = vunpack.c.h.b16 %v510
    %v613 = vunpack.c.l.b16 %v511
    %v614 = vunpack.c.h.b16 %v511
    %v615 = vunpack.c.l.b16 %v512
    %v616 = vunpack.c.h.b16 %v512
    %v617 = vunpack.c.l.b16 %v513
    %v618 = vunpack.c.h.b16 %v513
    %v619 = vunpack.c.l.b16 %v514
    %v620 = vunpack.c.h.b16 %v514
    %v621 = vunpack.c.l.b16 %v515
    %v622 = vunpack.c.h.b16 %v515
    %v623 = vunpack.c.l.b16 %v516
    %v624 = vunpack.c.h.b16 %v516
    %v625 = vpack.c.b16 %v563, %v561
    %v626 = vpack.c.b16 %v564, %v562
    %v627 = vpack.c.b16 %v567, %v565
    %v628 = vpack.c.b16 %v568, %v566
    %v629 = vpack.c.b16 %v571, %v569
    %v630 = vpack.c.b16 %v572, %v570
    %v631 = vpack.c.b16 %v575, %v573
    %v632 = vpack.c.b16 %v576, %v574
    %v633 = vpack.c.b16 %v579, %v577
    %v634 = vpack.c.b16 %v580, %v578
    %v635 = vpack.c.b16 %v583, %v581
    %v636 = vpack.c.b16 %v584, %v582
    %v637 = vpack.c.b16 %v587, %v585
    %v638 = vpack.c.b16 %v588, %v586
    %v639 = vpack.c.b16 %v591, %v589
    %v640 = vpack.c.b16 %v592, %v590
    %v641 = vpack.c.b16 %v595, %v593
    %v642 = vpack.c.b16 %v596, %v594
    %v643 = vpack.c.b16 %v599, %v597
    %v644 = vpack.c.b16 %v600, %v598
    %v645 = vpack.c.b16 %v603, %v601
    %v646 = vpack.c.b16 %v604, %v602
    %v647 = vpack.c.b16 %v607, %v605
    %v648 = vpack.c.b16 %v608, %v606
    %v649 = vpack.c.b16 %v611, %v609
    %v650 = vpack.c.b16 %v612, %v610
    %v651 = vpack.c.b16 %v615, %v613
    %v652 = vpack.c.b16 %v616, %v614
    %v653 = vpack.c.b16 %v619, %v617
    %v654 = vpack.c.b16 %v620, %v618
    %v655 = vpack.c.b16 %v623, %v621
    %v656 = vpack.c.b16 %v624, %v622
    %689 = vmatprep.subr.bf16.mxu0 %v626
    %690 = vmatpush1.bf16.msra.mxu0 %v625
    %691 = vmatprep.subr.bf16.mxu0 %v628
    %692 = vmatpush1.bf16.msra.mxu0 %v627
    %693 = vmatprep.subr.bf16.mxu0 %v630
    %694 = vmatpush1.bf16.msra.mxu0 %v629
    %695 = vmatprep.subr.bf16.mxu0 %v632
    %696 = vmatpush1.bf16.msra.mxu0 %v631
    %697 = vmatprep.subr.bf16.mxu0 %v634
    %698 = vmatpush1.bf16.msra.mxu0 %v633
    %699 = vmatprep.subr.bf16.mxu0 %v636
    %700 = vmatpush1.bf16.msra.mxu0 %v635
    %701 = vmatprep.subr.bf16.mxu0 %v638
    %702 = vmatpush1.bf16.msra.mxu0 %v637
    %703 = vmatprep.subr.bf16.mxu0 %v640
    %704 = vmatpush1.bf16.msra.mxu0 %v639
    %705 = vmatprep.subr.bf16.mxu0 %v642
    %706 = vmatpush1.bf16.msra.mxu0 %v641
    %707 = vmatprep.subr.bf16.mxu0 %v644
    %708 = vmatpush1.bf16.msra.mxu0 %v643
    %709 = vmatprep.subr.bf16.mxu0 %v646
    %710 = vmatpush1.bf16.msra.mxu0 %v645
    %711 = vmatprep.subr.bf16.mxu0 %v648
    %712 = vmatpush1.bf16.msra.mxu0 %v647
    %713 = vmatprep.subr.bf16.mxu0 %v650
    %714 = vmatpush1.bf16.msra.mxu0 %v649
    %715 = vmatprep.subr.bf16.mxu0 %v652
    %716 = vmatpush1.bf16.msra.mxu0 %v651
    %717 = vmatprep.subr.bf16.mxu0 %v654
    %718 = vmatpush1.bf16.msra.mxu0 %v653
    %719 = vmatprep.subr.bf16.mxu0 %v656
    %720 = vmatpush1.bf16.msra.mxu0 %v655
    %721 = vmatprep.mubr.bf16.mxu0 %v484
    %722 = vmatmul.mubr.bf16.gmra.mrb[0].mxu0 %v483
    %v723 = vpop.f32.mrb[0].mxu0
    %v724 = vadd.f32 %v522, %v723
    %v725 = vpop.f32.mrb[0].mxu0
    %v726 = vadd.f32 %v526, %v725
    %v727 = vpop.f32.mrb[0].mxu0
    %v728 = vpop.f32.mrb[0].mxu0
    %729 = vdwg.mxu0
    %730 = vst [vmem:[#allocation10] sm:$0xff] %v724
    %731 = vst [vmem:[#allocation10 + $0x8] sm:$0xff] %v726
    // Predicated region
    $region46: #{tpu_custom_call.1} parent=1 // pred_check
      _
    $region47: #{tpu_custom_call.1} parent=1 // pred_check_branch
      %733 = sbr.rel (0) target = $region49
    $region48: #{tpu_custom_call.1} parent=1 // pred_region
      %s735 = ssub.s32 256, 256
      %736 = vsyncadd [#allocation4], %s735
      %s738 = sshll.u32 [#allocation10], 4
      %s739 = int_to_ptr.vmem [resolvable:$true] %s738
      %741 = dma.vmem_to_hbm [thread:$0]  %s739, 256, %s7, [#allocation4]
    $region49: #{tpu_custom_call.1} parent=1 // pred_fallthru
      _
    // Predicated region
    $region50: #{tpu_custom_call.1} parent=1 // pred_check
      _
    $region51: #{tpu_custom_call.1} parent=1 // pred_check_branch
      %743 = sbr.rel (0) target = $region53
    $region52: #{tpu_custom_call.1} parent=1 // pred_region
      %744 = dma.done [#allocation4], 256
    $region53: #{tpu_custom_call.1} parent=1 // pred_fallthru
      _
    %745 = vsyncpa [#allocation3], 1
    %746 = vsyncpa [#allocation6], 1
    %747 = vsyncpa [#allocation9], 1
    %748 = vsyncpa [#allocation4], 1

</llo_original>
